<compile_context>
chip_gen: v6e
topology: v6e:2x2x1
jax: 0.10.0
libtpu: 0.0.40
codegen_flags: <defaults>
</compile_context>

<pallas_src>
import functools

import jax
import jax.numpy as jnp
from jax import lax
from jax.experimental import pallas as pl
from jax.experimental.pallas import tpu as pltpu

EPS = 1e-5  # PyTorch BatchNorm2d default eps


# ----------------------------------------------------------------------------
# Fused kernel: BN1+ReLU -> 1x1 conv -> BN2+ReLU -> 3x3 conv (pad=1) -> concat.
# One image per grid step.
# ----------------------------------------------------------------------------
def _bottleneck_kernel(x_sm_ref, x_cm_ref, s1_ref, b1_ref, w1_ref,
                       s2_ref, b2_ref, w3t_ref, ml_ref, mr_ref,
                       o_ref, sh_ref, *, H, W, Cin, Cmid, K):
    # x_sm_ref: (1, P, Cin)  pixel-major input (for the 1x1 matmul)
    # x_cm_ref: (1, Cin, P)  channel-major input (passthrough for the concat)
    # s1/b1:    (1, Cin)     BN1 scale/shift     w1: (Cin, Cmid)
    # s2/b2:    (1, Cmid)    BN2 scale/shift     w3t: (3, K, 3*Cmid)
    # ml/mr:    (P, 1)       column masks for the shifted taps
    # o_ref:    (1, Cin+K, P)   sh_ref: VMEM ((H+2)*W, 3*Cmid) f32 scratch
    P = H * W
    C3 = 3 * Cmid

    # ---- BN1 + ReLU + 1x1 conv (contraction over Cin, output lane-dense) ----
    t = jnp.maximum(x_sm_ref[0] * s1_ref[...] + b1_ref[...], 0.0)        # (P, Cin)
    h = jnp.dot(t, w1_ref[...], preferred_element_type=jnp.float32)      # (P, Cmid)

    # ---- BN2 + ReLU ----
    a = jnp.maximum(h * s2_ref[...] + b2_ref[...], 0.0)                  # (P, Cmid)

    # ---- dx-pre-shifted, zero-padded tap buffer --------------------------
    # sh[ry*W + x, dx*Cmid + c] == zero-padded activation at (ry, x+dx, c)
    z1 = jnp.zeros((1, Cmid), jnp.float32)
    a_dn = jnp.concatenate([z1, a[:P - 1, :]], axis=0)          # a[p-1]
    a_up = jnp.concatenate([a[1:, :], z1], axis=0)              # a[p+1]
    sh_ref[W:W + P, 0:Cmid] = ml_ref[...] * a_dn                # dx=0 (zero at x==0)
    sh_ref[W:W + P, Cmid:2 * Cmid] = a                          # dx=1 (center)
    sh_ref[W:W + P, 2 * Cmid:C3] = mr_ref[...] * a_up           # dx=2 (zero at x==W-1)
    zrow = jnp.zeros((W, C3), jnp.float32)
    sh_ref[0:W, :] = zrow                                       # top padding row
    sh_ref[W + P:2 * W + P, :] = zrow                           # bottom padding row

    # ---- 3x3 conv: 3 NT dots (one per kernel row), lane-dense (K, P) acc ----
    acc = jnp.zeros((K, P), jnp.float32)
    for dy in range(3):                                         # static unroll
        win = sh_ref[dy * W:dy * W + P, :]                      # (P, 3*Cmid), aligned
        acc = acc + lax.dot_general(
            w3t_ref[dy], win, (((1,), (1,)), ((), ())),
            preferred_element_type=jnp.float32)                 # (K, P)

    # ---- concat([input, conv2_out], channel axis), NCHW-native store -------
    o_ref[0, 0:Cin, :] = x_cm_ref[0]
    o_ref[0, Cin:Cin + K, :] = acc


# ----------------------------------------------------------------------------
# Full Bottleneck forward (NCHW in / NCHW out, like the PyTorch module).
# ----------------------------------------------------------------------------
def bottleneck_forward(x_nchw, params):
    N, Cin, H, W = x_nchw.shape
    P = H * W
    w1 = params["w1"].astype(jnp.float32)            # (Cin, 4k)
    w2 = params["w2"].astype(jnp.float32)            # (3, 3, 4k, k)  HWIO
    Cmid = w1.shape[1]
    K = w2.shape[3]

    x = x_nchw.astype(jnp.float32)
    x_cm = x.reshape(N, Cin, P)                      # free reshape of NCHW
    x_sm = jnp.transpose(x_cm, (0, 2, 1))            # (N, P, Cin) pixel-major (tiny)

    # BN1 training-mode batch stats (biased variance) -- tiny glue on x.
    mean1 = jnp.mean(x_cm, axis=(0, 2))
    var1 = jnp.mean(jnp.square(x_cm - mean1[None, :, None]), axis=(0, 2))
    scale1 = params["gamma1"] / jnp.sqrt(var1 + EPS)
    shift1 = params["beta1"] - mean1 * scale1

    # BN2 batch stats WITHOUT materializing conv1's output:
    # h = relu(bn1(x)) @ w1 is linear in t := relu(bn1(x)), so E[h] and E[h^2]
    # follow from the 1st/2nd moments of t (a (Cin,)+(Cin,Cin) reduction over
    # the tiny input instead of two HBM passes over the (N,H,W,4k) tensor).
    t_cm = jnp.maximum(x_cm * scale1[None, :, None] + shift1[None, :, None], 0.0)
    m_tot = N * P
    s1_t = jnp.sum(t_cm, axis=(0, 2))                            # (Cin,)
    s2_t = jnp.einsum("ncp,ndp->cd", t_cm, t_cm)                 # (Cin, Cin)
    mean2 = (s1_t @ w1) / m_tot
    ex2 = jnp.einsum("cj,cd,dj->j", w1, s2_t, w1) / m_tot
    var2 = jnp.maximum(ex2 - jnp.square(mean2), 0.0)             # biased variance
    scale2 = params["gamma2"] / jnp.sqrt(var2 + EPS)
    shift2 = params["beta2"] - mean2 * scale2

    # conv2 weights: (3,3,Cmid,K) -> (3, K, 3*Cmid), dx-major like the tap buffer.
    w3t = jnp.transpose(w2.reshape(3, 3 * Cmid, K), (0, 2, 1))

    # Column masks for the dx=0 / dx=2 shifted taps (left/right zero padding).
    xcoord = jnp.arange(P, dtype=jnp.int32) % W
    mask_l = (xcoord != 0).astype(jnp.float32).reshape(P, 1)
    mask_r = (xcoord != W - 1).astype(jnp.float32).reshape(P, 1)

    kernel = functools.partial(_bottleneck_kernel, H=H, W=W, Cin=Cin,
                               Cmid=Cmid, K=K)

    out = pl.pallas_call(
        kernel,
        out_shape=jax.ShapeDtypeStruct((N, Cin + K, P), jnp.float32),
        grid_spec=pltpu.PrefetchScalarGridSpec(
            num_scalar_prefetch=0,
            grid=(N,),
            in_specs=[
                pl.BlockSpec((1, P, Cin), lambda n: (n, 0, 0)),        # x pixel-major
                pl.BlockSpec((1, Cin, P), lambda n: (n, 0, 0)),        # x channel-major
                pl.BlockSpec((1, Cin), lambda n: (0, 0)),              # scale1
                pl.BlockSpec((1, Cin), lambda n: (0, 0)),              # shift1
                pl.BlockSpec((Cin, Cmid), lambda n: (0, 0)),           # w1
                pl.BlockSpec((1, Cmid), lambda n: (0, 0)),             # scale2
                pl.BlockSpec((1, Cmid), lambda n: (0, 0)),             # shift2
                pl.BlockSpec((3, K, 3 * Cmid), lambda n: (0, 0, 0)),   # w3t
                pl.BlockSpec((P, 1), lambda n: (0, 0)),                # mask_l
                pl.BlockSpec((P, 1), lambda n: (0, 0)),                # mask_r
            ],
            out_specs=pl.BlockSpec((1, Cin + K, P), lambda n: (n, 0, 0)),
            scratch_shapes=[pltpu.VMEM(((H + 2) * W, 3 * Cmid), jnp.float32)],
        ),
        compiler_params=pltpu.CompilerParams(
            dimension_semantics=("parallel",),
        ),
    )(x_sm, x_cm, scale1.reshape(1, Cin), shift1.reshape(1, Cin), w1,
      scale2.reshape(1, Cmid), shift2.reshape(1, Cmid), w3t, mask_l, mask_r)

    return out.reshape(N, Cin + K, H, W)


# Pure-JAX reference (same math, lax.conv) for correctness checking.
def bottleneck_ref(x_nchw, params):
    x = jnp.transpose(x_nchw, (0, 2, 3, 1)).astype(jnp.float32)

    def bn(v, gamma, beta):
        m = jnp.mean(v, axis=(0, 1, 2))
        var = jnp.mean((v - m) ** 2, axis=(0, 1, 2))
        return (v - m) / jnp.sqrt(var + EPS) * gamma + beta

    t = jax.nn.relu(bn(x, params["gamma1"], params["beta1"]))
    h = lax.conv_general_dilated(t, params["w1"][None, None, :, :], (1, 1),
                                 "VALID",
                                 dimension_numbers=("NHWC", "HWIO", "NHWC"))
    t2 = jax.nn.relu(bn(h, params["gamma2"], params["beta2"]))
    y = lax.conv_general_dilated(t2, params["w2"], (1, 1), ((1, 1), (1, 1)),
                                 dimension_numbers=("NHWC", "HWIO", "NHWC"))
    y_nchw = jnp.transpose(y, (0, 3, 1, 2))
    return jnp.concatenate([x_nchw.astype(jnp.float32), y_nchw], axis=1)


if __name__ == "__main__":
    inc, k = 4, 32          # Conv1: inc -> 4k = 128,  Conv2: 128 -> 32
    N, H, W = 2, 16, 16

    root = jax.random.PRNGKey(0)
    kx, k0, k1, k2, k3, k4, k5 = jax.random.split(root, 7)

    params = {
        # Conv1 weight: PyTorch (4k, inc, 1, 1) -> stored here as (inc, 4k)
        "w1": 0.2 * jax.random.normal(k2, (inc, 4 * k), jnp.float32),
        # Conv2 weight: PyTorch (k, 4k, 3, 3) -> stored here as HWIO (3, 3, 4k, k)
        "w2": 0.05 * jax.random.normal(k5, (3, 3, 4 * k, k), jnp.float32),
        "gamma1": 1.0 + 0.1 * jax.random.normal(k0, (inc,), jnp.float32),
        "beta1": 0.1 * jax.random.normal(k1, (inc,), jnp.float32),
        "gamma2": 1.0 + 0.1 * jax.random.normal(k3, (4 * k,), jnp.float32),
        "beta2": 0.1 * jax.random.normal(k4, (4 * k,), jnp.float32),
    }

    x = jax.random.normal(kx, (N, inc, H, W), jnp.float32)  # NCHW, like PyTorch

    fwd = jax.jit(bottleneck_forward)
    out = jax.block_until_ready(fwd(x, params))
    ref = jax.block_until_ready(bottleneck_ref(x, params))

    assert out.shape == (N, inc + k, H, W), out.shape
    max_err = float(jnp.max(jnp.abs(out - ref)))
    assert jnp.allclose(out, ref, atol=1e-3, rtol=1e-3), max_err
    print("KERNEL_OK")
</pallas_src>

<mosaic_0001>
module attributes {stable_mosaic.version = 11 : i64} {
  func.func @_bottleneck_kernel(%arg0: i32, %arg1: memref<1x256x4xf32, #tpu.memory_space<vmem>>, %arg2: memref<1x4x256xf32, #tpu.memory_space<vmem>>, %arg3: memref<1x4xf32, #tpu.memory_space<vmem>>, %arg4: memref<1x4xf32, #tpu.memory_space<vmem>>, %arg5: memref<4x128xf32, #tpu.memory_space<vmem>>, %arg6: memref<1x128xf32, #tpu.memory_space<vmem>>, %arg7: memref<1x128xf32, #tpu.memory_space<vmem>>, %arg8: memref<3x32x384xf32, #tpu.memory_space<vmem>>, %arg9: memref<256x1xf32, #tpu.memory_space<vmem>>, %arg10: memref<256x1xf32, #tpu.memory_space<vmem>>, %arg11: memref<1x36x256xf32, #tpu.memory_space<vmem>>, %arg12: memref<288x384xf32, #tpu.memory_space<vmem>>) attributes {dimension_semantics = [#tpu.dimension_semantics<parallel>], iteration_bounds = array<i64: 2>, scalar_prefetch = 0 : i64, scratch_operands = 1 : i64, tpu.core_type = #tpu.core_type<tc>, window_params = [{transform_indices = @transform_0, window_bounds = array<i64: 1, 256, 4>}, {transform_indices = @transform_1, window_bounds = array<i64: 1, 4, 256>}, {pipeline_mode = #tpu.pipeline_mode<synchronous>, transform_indices = @transform_2, window_bounds = array<i64: 1, 4>}, {pipeline_mode = #tpu.pipeline_mode<synchronous>, transform_indices = @transform_3, window_bounds = array<i64: 1, 4>}, {pipeline_mode = #tpu.pipeline_mode<synchronous>, transform_indices = @transform_4, window_bounds = array<i64: 4, 128>}, {pipeline_mode = #tpu.pipeline_mode<synchronous>, transform_indices = @transform_5, window_bounds = array<i64: 1, 128>}, {pipeline_mode = #tpu.pipeline_mode<synchronous>, transform_indices = @transform_6, window_bounds = array<i64: 1, 128>}, {pipeline_mode = #tpu.pipeline_mode<synchronous>, transform_indices = @transform_7, window_bounds = array<i64: 3, 32, 384>}, {pipeline_mode = #tpu.pipeline_mode<synchronous>, transform_indices = @transform_8, window_bounds = array<i64: 256, 1>}, {pipeline_mode = #tpu.pipeline_mode<synchronous>, transform_indices = @transform_9, window_bounds = array<i64: 256, 1>}, {transform_indices = @transform_10, window_bounds = array<i64: 1, 36, 256>}]} {
    %c0 = arith.constant 0 : index
    %c0_0 = arith.constant 0 : index
    %c0_1 = arith.constant 0 : index
    %0 = vector.load %arg1[%c0, %c0_0, %c0_1] : memref<1x256x4xf32, #tpu.memory_space<vmem>>, vector<1x256x4xf32>
    %1 = vector.shape_cast %0 : vector<1x256x4xf32> to vector<256x4xf32>
    %c0_2 = arith.constant 0 : index
    %c0_3 = arith.constant 0 : index
    %2 = vector.load %arg3[%c0_2, %c0_3] : memref<1x4xf32, #tpu.memory_space<vmem>>, vector<1x4xf32>
    %3 = vector.broadcast %2 : vector<1x4xf32> to vector<256x4xf32>
    %4 = arith.mulf %1, %3 : vector<256x4xf32>
    %c0_4 = arith.constant 0 : index
    %c0_5 = arith.constant 0 : index
    %5 = vector.load %arg4[%c0_4, %c0_5] : memref<1x4xf32, #tpu.memory_space<vmem>>, vector<1x4xf32>
    %6 = vector.broadcast %5 : vector<1x4xf32> to vector<256x4xf32>
    %7 = arith.addf %4, %6 : vector<256x4xf32>
    %cst = arith.constant 0.000000e+00 : f32
    %8 = vector.broadcast %cst : f32 to vector<256x4xf32>
    %9 = arith.maximumf %7, %8 : vector<256x4xf32>
    %c0_6 = arith.constant 0 : index
    %c0_7 = arith.constant 0 : index
    %10 = vector.load %arg5[%c0_6, %c0_7] : memref<4x128xf32, #tpu.memory_space<vmem>>, vector<4x128xf32>
    %cst_8 = arith.constant dense<0.000000e+00> : vector<256x128xf32>
    %11 = tpu.matmul %9, %10, %cst_8 {dimension_numbers = #tpu.dot_dimension_numbers<[1], [0], [0], [1], [0, 0, 1, 1], [], []>} : vector<256x4xf32>, vector<4x128xf32>, vector<256x128xf32> -> vector<256x128xf32>
    %c0_9 = arith.constant 0 : index
    %c0_10 = arith.constant 0 : index
    %12 = vector.load %arg6[%c0_9, %c0_10] : memref<1x128xf32, #tpu.memory_space<vmem>>, vector<1x128xf32>
    %13 = vector.broadcast %12 : vector<1x128xf32> to vector<256x128xf32>
    %14 = arith.mulf %11, %13 : vector<256x128xf32>
    %c0_11 = arith.constant 0 : index
    %c0_12 = arith.constant 0 : index
    %15 = vector.load %arg7[%c0_11, %c0_12] : memref<1x128xf32, #tpu.memory_space<vmem>>, vector<1x128xf32>
    %16 = vector.broadcast %15 : vector<1x128xf32> to vector<256x128xf32>
    %17 = arith.addf %14, %16 : vector<256x128xf32>
    %cst_13 = arith.constant 0.000000e+00 : f32
    %18 = vector.broadcast %cst_13 : f32 to vector<256x128xf32>
    %19 = arith.maximumf %17, %18 : vector<256x128xf32>
    %cst_14 = arith.constant 0.000000e+00 : f32
    %20 = vector.broadcast %cst_14 : f32 to vector<1x128xf32>
    %21 = vector.extract_strided_slice %19 {offsets = [0, 0], sizes = [255, 128], strides = [1, 1]} : vector<256x128xf32> to vector<255x128xf32>
    %22 = tpu.concatenate %20, %21 in 0 : vector<1x128xf32>, vector<255x128xf32> -> vector<256x128xf32>
    %23 = vector.extract_strided_slice %19 {offsets = [1, 0], sizes = [255, 128], strides = [1, 1]} : vector<256x128xf32> to vector<255x128xf32>
    %24 = tpu.concatenate %23, %20 in 0 : vector<255x128xf32>, vector<1x128xf32> -> vector<256x128xf32>
    %c0_15 = arith.constant 0 : index
    %c0_16 = arith.constant 0 : index
    %25 = vector.load %arg9[%c0_15, %c0_16] : memref<256x1xf32, #tpu.memory_space<vmem>>, vector<256x1xf32>
    %26 = vector.broadcast %25 : vector<256x1xf32> to vector<256x128xf32>
    %27 = arith.mulf %26, %22 : vector<256x128xf32>
    %c16 = arith.constant 16 : index
    %c0_17 = arith.constant 0 : index
    %28 = vector.load %arg12[%c16, %c0_17] : memref<288x384xf32, #tpu.memory_space<vmem>>, vector<256x128xf32>
    tpu.vector_store %arg12[%c16, %c0_17], %27 {strides = array<i32>} : memref<288x384xf32, #tpu.memory_space<vmem>>, vector<256x128xf32>,
    %c16_18 = arith.constant 16 : index
    %c128 = arith.constant 128 : index
    %29 = vector.load %arg12[%c16_18, %c128] : memref<288x384xf32, #tpu.memory_space<vmem>>, vector<256x128xf32>
    tpu.vector_store %arg12[%c16_18, %c128], %19 {strides = array<i32>} : memref<288x384xf32, #tpu.memory_space<vmem>>, vector<256x128xf32>,
    %c0_19 = arith.constant 0 : index
    %c0_20 = arith.constant 0 : index
    %30 = vector.load %arg10[%c0_19, %c0_20] : memref<256x1xf32, #tpu.memory_space<vmem>>, vector<256x1xf32>
    %31 = vector.broadcast %30 : vector<256x1xf32> to vector<256x128xf32>
    %32 = arith.mulf %31, %24 : vector<256x128xf32>
    %c16_21 = arith.constant 16 : index
    %c256 = arith.constant 256 : index
    %33 = vector.load %arg12[%c16_21, %c256] : memref<288x384xf32, #tpu.memory_space<vmem>>, vector<256x128xf32>
    tpu.vector_store %arg12[%c16_21, %c256], %32 {strides = array<i32>} : memref<288x384xf32, #tpu.memory_space<vmem>>, vector<256x128xf32>,
    %cst_22 = arith.constant 0.000000e+00 : f32
    %34 = vector.broadcast %cst_22 : f32 to vector<16x384xf32>
    %c0_23 = arith.constant 0 : index
    %c0_24 = arith.constant 0 : index
    %35 = vector.load %arg12[%c0_23, %c0_24] : memref<288x384xf32, #tpu.memory_space<vmem>>, vector<16x384xf32>
    tpu.vector_store %arg12[%c0_23, %c0_24], %34 {strides = array<i32>} : memref<288x384xf32, #tpu.memory_space<vmem>>, vector<16x384xf32>,
    %c272 = arith.constant 272 : index
    %c0_25 = arith.constant 0 : index
    %36 = vector.load %arg12[%c272, %c0_25] : memref<288x384xf32, #tpu.memory_space<vmem>>, vector<16x384xf32>
    tpu.vector_store %arg12[%c272, %c0_25], %34 {strides = array<i32>} : memref<288x384xf32, #tpu.memory_space<vmem>>, vector<16x384xf32>,
    %cst_26 = arith.constant 0.000000e+00 : f32
    %37 = vector.broadcast %cst_26 : f32 to vector<32x256xf32>
    %c0_27 = arith.constant 0 : index
    %c0_28 = arith.constant 0 : index
    %38 = vector.load %arg12[%c0_27, %c0_28] : memref<288x384xf32, #tpu.memory_space<vmem>>, vector<256x384xf32>
    %c0_29 = arith.constant 0 : index
    %c0_30 = arith.constant 0 : index
    %c0_31 = arith.constant 0 : index
    %39 = vector.load %arg8[%c0_29, %c0_30, %c0_31] : memref<3x32x384xf32, #tpu.memory_space<vmem>>, vector<1x32x384xf32>
    %40 = vector.shape_cast %39 : vector<1x32x384xf32> to vector<32x384xf32>
    %cst_32 = arith.constant dense<0.000000e+00> : vector<32x256xf32>
    %41 = tpu.matmul %40, %38, %cst_32 {dimension_numbers = #tpu.dot_dimension_numbers<[1], [1], [0], [0], [0, 0, 1, 0], [], []>} : vector<32x384xf32>, vector<256x384xf32>, vector<32x256xf32> -> vector<32x256xf32>
    %42 = arith.addf %37, %41 : vector<32x256xf32>
    %c16_33 = arith.constant 16 : index
    %c0_34 = arith.constant 0 : index
    %43 = vector.load %arg12[%c16_33, %c0_34] : memref<288x384xf32, #tpu.memory_space<vmem>>, vector<256x384xf32>
    %c1 = arith.constant 1 : index
    %c0_35 = arith.constant 0 : index
    %c0_36 = arith.constant 0 : index
    %44 = vector.load %arg8[%c1, %c0_35, %c0_36] : memref<3x32x384xf32, #tpu.memory_space<vmem>>, vector<1x32x384xf32>
    %45 = vector.shape_cast %44 : vector<1x32x384xf32> to vector<32x384xf32>
    %cst_37 = arith.constant dense<0.000000e+00> : vector<32x256xf32>
    %46 = tpu.matmul %45, %43, %cst_37 {dimension_numbers = #tpu.dot_dimension_numbers<[1], [1], [0], [0], [0, 0, 1, 0], [], []>} : vector<32x384xf32>, vector<256x384xf32>, vector<32x256xf32> -> vector<32x256xf32>
    %47 = arith.addf %42, %46 : vector<32x256xf32>
    %c32 = arith.constant 32 : index
    %c0_38 = arith.constant 0 : index
    %48 = vector.load %arg12[%c32, %c0_38] : memref<288x384xf32, #tpu.memory_space<vmem>>, vector<256x384xf32>
    %c2 = arith.constant 2 : index
    %c0_39 = arith.constant 0 : index
    %c0_40 = arith.constant 0 : index
    %49 = vector.load %arg8[%c2, %c0_39, %c0_40] : memref<3x32x384xf32, #tpu.memory_space<vmem>>, vector<1x32x384xf32>
    %50 = vector.shape_cast %49 : vector<1x32x384xf32> to vector<32x384xf32>
    %cst_41 = arith.constant dense<0.000000e+00> : vector<32x256xf32>
    %51 = tpu.matmul %50, %48, %cst_41 {dimension_numbers = #tpu.dot_dimension_numbers<[1], [1], [0], [0], [0, 0, 1, 0], [], []>} : vector<32x384xf32>, vector<256x384xf32>, vector<32x256xf32> -> vector<32x256xf32>
    %52 = arith.addf %47, %51 : vector<32x256xf32>
    %c0_42 = arith.constant 0 : index
    %c0_43 = arith.constant 0 : index
    %c0_44 = arith.constant 0 : index
    %53 = vector.load %arg2[%c0_42, %c0_43, %c0_44] : memref<1x4x256xf32, #tpu.memory_space<vmem>>, vector<1x4x256xf32>
    %54 = vector.shape_cast %53 : vector<1x4x256xf32> to vector<4x256xf32>
    %c0_45 = arith.constant 0 : index
    %c0_46 = arith.constant 0 : index
    %c0_47 = arith.constant 0 : index
    %55 = vector.load %arg11[%c0_45, %c0_46, %c0_47] : memref<1x36x256xf32, #tpu.memory_space<vmem>>, vector<1x4x256xf32>
    %56 = vector.shape_cast %55 : vector<1x4x256xf32> to vector<4x256xf32>
    %57 = vector.shape_cast %54 : vector<4x256xf32> to vector<1x4x256xf32>
    tpu.vector_store %arg11[%c0_45, %c0_46, %c0_47], %57 {strides = array<i32>} : memref<1x36x256xf32, #tpu.memory_space<vmem>>, vector<1x4x256xf32>,
    %c0_48 = arith.constant 0 : index
    %c4 = arith.constant 4 : index
    %c0_49 = arith.constant 0 : index
    %58 = vector.load %arg11[%c0_48, %c4, %c0_49] : memref<1x36x256xf32, #tpu.memory_space<vmem>>, vector<1x32x256xf32>
    %59 = vector.shape_cast %58 : vector<1x32x256xf32> to vector<32x256xf32>
    %60 = vector.shape_cast %52 : vector<32x256xf32> to vector<1x32x256xf32>
    tpu.vector_store %arg11[%c0_48, %c4, %c0_49], %60 {strides = array<i32>} : memref<1x36x256xf32, #tpu.memory_space<vmem>>, vector<1x32x256xf32>,
    return
  }
  func.func @transform_0(%arg0: i32) -> (i32, i32, i32) {
    %c0_i32 = arith.constant 0 : i32
    %c0_i32_0 = arith.constant 0 : i32
    %c0_i32_1 = arith.constant 0 : i32
    return %arg0, %c0_i32, %c0_i32_0 : i32, i32, i32
  }
  func.func @transform_1(%arg0: i32) -> (i32, i32, i32) {
    %c0_i32 = arith.constant 0 : i32
    %c0_i32_0 = arith.constant 0 : i32
    %c0_i32_1 = arith.constant 0 : i32
    return %arg0, %c0_i32, %c0_i32_0 : i32, i32, i32
  }
  func.func @transform_2(%arg0: i32) -> (i32, i32) {
    %c0_i32 = arith.constant 0 : i32
    %c0_i32_0 = arith.constant 0 : i32
    %c0_i32_1 = arith.constant 0 : i32
    return %c0_i32, %c0_i32_0 : i32, i32
  }
  func.func @transform_3(%arg0: i32) -> (i32, i32) {
    %c0_i32 = arith.constant 0 : i32
    %c0_i32_0 = arith.constant 0 : i32
    %c0_i32_1 = arith.constant 0 : i32
    return %c0_i32, %c0_i32_0 : i32, i32
  }
  func.func @transform_4(%arg0: i32) -> (i32, i32) {
    %c0_i32 = arith.constant 0 : i32
    %c0_i32_0 = arith.constant 0 : i32
    %c0_i32_1 = arith.constant 0 : i32
    return %c0_i32, %c0_i32_0 : i32, i32
  }
  func.func @transform_5(%arg0: i32) -> (i32, i32) {
    %c0_i32 = arith.constant 0 : i32
    %c0_i32_0 = arith.constant 0 : i32
    %c0_i32_1 = arith.constant 0 : i32
    return %c0_i32, %c0_i32_0 : i32, i32
  }
  func.func @transform_6(%arg0: i32) -> (i32, i32) {
    %c0_i32 = arith.constant 0 : i32
    %c0_i32_0 = arith.constant 0 : i32
    %c0_i32_1 = arith.constant 0 : i32
    return %c0_i32, %c0_i32_0 : i32, i32
  }
  func.func @transform_7(%arg0: i32) -> (i32, i32, i32) {
    %c0_i32 = arith.constant 0 : i32
    %c0_i32_0 = arith.constant 0 : i32
    %c0_i32_1 = arith.constant 0 : i32
    %c0_i32_2 = arith.constant 0 : i32
    return %c0_i32, %c0_i32_0, %c0_i32_1 : i32, i32, i32
  }
  func.func @transform_8(%arg0: i32) -> (i32, i32) {
    %c0_i32 = arith.constant 0 : i32
    %c0_i32_0 = arith.constant 0 : i32
    %c0_i32_1 = arith.constant 0 : i32
    return %c0_i32, %c0_i32_0 : i32, i32
  }
  func.func @transform_9(%arg0: i32) -> (i32, i32) {
    %c0_i32 = arith.constant 0 : i32
    %c0_i32_0 = arith.constant 0 : i32
    %c0_i32_1 = arith.constant 0 : i32
    return %c0_i32, %c0_i32_0 : i32, i32
  }
  func.func @transform_10(%arg0: i32) -> (i32, i32, i32) {
    %c0_i32 = arith.constant 0 : i32
    %c0_i32_0 = arith.constant 0 : i32
    %c0_i32_1 = arith.constant 0 : i32
    return %arg0, %c0_i32, %c0_i32_0 : i32, i32, i32
  }
}

</mosaic_0001>

<llo_original>
// kernel: bottleneck_forward.1
$region0: #{bottleneck_forward.1}
  #allocation0 [shape = 'u32[]', space=smem, size = 0x4, offset = 0x4, fixed_abs, tag = 'smem constant byte address 0x4 - core index']
  #allocation1 [shape = 'u32[144,128]{1,0:T(1,128)}', space=vmem, size = 0x12000, scoped, tag = 'internal scratch']
  #allocation2 [shape = 'f32[288,384]{1,0:T(8,128)}', space=vmem, size = 0x6c000, scoped, tag = 'scratch operand']
  %s0 = inlined_call_operand.vmem [shape: f32[2,256,4], index: 0, kind: input, shape index: {}]
  %s1 = inlined_call_operand.vmem [shape: f32[2,4,256], index: 1, kind: input, shape index: {}]
  %s2 = inlined_call_operand.vmem [shape: f32[1,4], index: 2, kind: input, shape index: {}]
  %s3 = inlined_call_operand.vmem [shape: f32[1,4], index: 3, kind: input, shape index: {}]
  %s4 = inlined_call_operand.vmem [shape: f32[4,128], index: 4, kind: input, shape index: {}]
  %s5 = inlined_call_operand.vmem [shape: f32[1,128], index: 5, kind: input, shape index: {}]
  %s6 = inlined_call_operand.vmem [shape: f32[1,128], index: 6, kind: input, shape index: {}]
  %s7 = inlined_call_operand.vmem [shape: f32[3,32,384], index: 7, kind: input, shape index: {}]
  %s8 = inlined_call_operand.vmem [shape: f32[256,1], index: 8, kind: input, shape index: {}]
  %s9 = inlined_call_operand.vmem [shape: f32[256,1], index: 9, kind: input, shape index: {}]
  %s10 = inlined_call_operand.vmem [shape: f32[2,36,256], index: 10, kind: output, shape index: {}]
  %s11 = sld [smem:[#allocation0]]
  $region73: #{bottleneck_forward.1} parent=0
    _
  %s13 = ssub.s32 1, %s11
  %s14 = scalar_select 0, %s13, %s11
  loop: start=0, step=1, limit=4
  $region2: #{bottleneck_forward.1} parent=0 // loop_pre_header
    _
  $region3: #{bottleneck_forward.1} parent=0 // loop_header
    %s16 = sphi 0, %s20
    %p17 = scmp.ge.s32.totalorder %s16, 4
    %s26 = sphi 0, %s28
    %s29 = sphi 0, %s26
    %s30 = sphi 0, %s29
    %s46 = sphi 0, %s30
    %s52 = sphi 0, %s54
    %s55 = sphi 0, %s52
    %s56 = sphi 0, %s55
    %s72 = sphi 0, %s56
    %s76 = sphi 0, %s76
    %s78 = sphi 0, %s76
    %s79 = sphi 0, %s78
    %s93 = sphi 0, %s79
    %s97 = sphi 0, %s97
    %s99 = sphi 0, %s97
    %s100 = sphi 0, %s99
    %s114 = sphi 0, %s100
    %s118 = sphi 0, %s118
    %s120 = sphi 0, %s118
    %s121 = sphi 0, %s120
    %s135 = sphi 0, %s121
    %s139 = sphi 0, %s139
    %s141 = sphi 0, %s139
    %s142 = sphi 0, %s141
    %s156 = sphi 0, %s142
    %s160 = sphi 0, %s160
    %s162 = sphi 0, %s160
    %s163 = sphi 0, %s162
    %s177 = sphi 0, %s163
    %s181 = sphi 0, %s181
    %s183 = sphi 0, %s181
    %s184 = sphi 0, %s183
    %s198 = sphi 0, %s184
    %s202 = sphi 0, %s202
    %s204 = sphi 0, %s202
    %s205 = sphi 0, %s204
    %s219 = sphi 0, %s205
    %s223 = sphi 0, %s223
    %s225 = sphi 0, %s223
    %s226 = sphi 0, %s225
    %s240 = sphi 0, %s226
    %s246 = sphi 0, %s248
    %s249 = sphi 0, %s246
    %s250 = sphi 0, %s249
    %s266 = sphi 0, %s250
  $region4: #{bottleneck_forward.1} parent=0 // loop_header_branch
    %19 = sbr.rel (%p17) target = $region8
  $region5: #{bottleneck_forward.1} parent=0 // loop_body
    %s21 = ssub.s32 %s16, 1
    %s22 = ssub.s32 %s16, 2
    %s23 = sadd.s32 %s16, 1
    %s24 = ssub.s32 %s16, %s23
    %p25 = scmp.eq.s32.totalorder %s24, 0
    %s27 = sadd.s32 %s26, 1
    %s28 = scalar_select %p25, %s26, %s27
    %p31 = pneg %p25
    %p32 = scmp.eq.s32.totalorder %s16, 1
    %p33 = por %p31, %p32
    %p34 = scmp.ne.s32.totalorder %s26, %s29
    %p35 = scmp.eq.s32.totalorder %s16, 0
    %p36 = por %p34, %p35
    %p37 = scmp.ne.s32.totalorder %s26, %s29
    %p38 = scmp.eq.s32.totalorder %s21, 1
    %p39 = por %p37, %p38
    %p40 = scmp.ne.s32.totalorder %s29, %s30
    %p41 = scmp.eq.s32.totalorder %s21, 0
    %p42 = por %p40, %p41
    %p43 = scmp.ne.s32.totalorder %s29, %s30
    %p44 = scmp.eq.s32.totalorder %s22, 1
    %p45 = por %p43, %p44
    %p47 = scmp.ne.s32.totalorder %s30, %s46
    %p48 = scmp.eq.s32.totalorder %s22, 0
    %p49 = por %p47, %p48
    %s50 = ssub.s32 %s16, %s23
    %p51 = scmp.eq.s32.totalorder %s50, 0
    %s53 = sadd.s32 %s52, 1
    %s54 = scalar_select %p51, %s52, %s53
    %p57 = pneg %p51
    %p58 = scmp.eq.s32.totalorder %s16, 1
    %p59 = por %p57, %p58
    %p60 = scmp.ne.s32.totalorder %s52, %s55
    %p61 = scmp.eq.s32.totalorder %s16, 0
    %p62 = por %p60, %p61
    %p63 = scmp.ne.s32.totalorder %s52, %s55
    %p64 = scmp.eq.s32.totalorder %s21, 1
    %p65 = por %p63, %p64
    %p66 = scmp.ne.s32.totalorder %s55, %s56
    %p67 = scmp.eq.s32.totalorder %s21, 0
    %p68 = por %p66, %p67
    %p69 = scmp.ne.s32.totalorder %s55, %s56
    %p70 = scmp.eq.s32.totalorder %s22, 1
    %p71 = por %p69, %p70
    %p73 = scmp.ne.s32.totalorder %s56, %s72
    %p74 = scmp.eq.s32.totalorder %s22, 0
    %p75 = por %p73, %p74
    %s77 = sadd.s32 %s76, 1
    %p80 = scmp.eq.s32.totalorder %s16, 1
    %p81 = scmp.ne.s32.totalorder %s76, %s78
    %p82 = scmp.eq.s32.totalorder %s16, 0
    %p83 = por %p81, %p82
    %p84 = scmp.ne.s32.totalorder %s76, %s78
    %p85 = scmp.eq.s32.totalorder %s21, 1
    %p86 = por %p84, %p85
    %p87 = scmp.ne.s32.totalorder %s78, %s79
    %p88 = scmp.eq.s32.totalorder %s21, 0
    %p89 = por %p87, %p88
    %p90 = scmp.ne.s32.totalorder %s78, %s79
    %p91 = scmp.eq.s32.totalorder %s22, 1
    %p92 = por %p90, %p91
    %p94 = scmp.ne.s32.totalorder %s79, %s93
    %p95 = scmp.eq.s32.totalorder %s22, 0
    %p96 = por %p94, %p95
    %s98 = sadd.s32 %s97, 1
    %p101 = scmp.eq.s32.totalorder %s16, 1
    %p102 = scmp.ne.s32.totalorder %s97, %s99
    %p103 = scmp.eq.s32.totalorder %s16, 0
    %p104 = por %p102, %p103
    %p105 = scmp.ne.s32.totalorder %s97, %s99
    %p106 = scmp.eq.s32.totalorder %s21, 1
    %p107 = por %p105, %p106
    %p108 = scmp.ne.s32.totalorder %s99, %s100
    %p109 = scmp.eq.s32.totalorder %s21, 0
    %p110 = por %p108, %p109
    %p111 = scmp.ne.s32.totalorder %s99, %s100
    %p112 = scmp.eq.s32.totalorder %s22, 1
    %p113 = por %p111, %p112
    %p115 = scmp.ne.s32.totalorder %s100, %s114
    %p116 = scmp.eq.s32.totalorder %s22, 0
    %p117 = por %p115, %p116
    %s119 = sadd.s32 %s118, 1
    %p122 = scmp.eq.s32.totalorder %s16, 1
    %p123 = scmp.ne.s32.totalorder %s118, %s120
    %p124 = scmp.eq.s32.totalorder %s16, 0
    %p125 = por %p123, %p124
    %p126 = scmp.ne.s32.totalorder %s118, %s120
    %p127 = scmp.eq.s32.totalorder %s21, 1
    %p128 = por %p126, %p127
    %p129 = scmp.ne.s32.totalorder %s120, %s121
    %p130 = scmp.eq.s32.totalorder %s21, 0
    %p131 = por %p129, %p130
    %p132 = scmp.ne.s32.totalorder %s120, %s121
    %p133 = scmp.eq.s32.totalorder %s22, 1
    %p134 = por %p132, %p133
    %p136 = scmp.ne.s32.totalorder %s121, %s135
    %p137 = scmp.eq.s32.totalorder %s22, 0
    %p138 = por %p136, %p137
    %s140 = sadd.s32 %s139, 1
    %p143 = scmp.eq.s32.totalorder %s16, 1
    %p144 = scmp.ne.s32.totalorder %s139, %s141
    %p145 = scmp.eq.s32.totalorder %s16, 0
    %p146 = por %p144, %p145
    %p147 = scmp.ne.s32.totalorder %s139, %s141
    %p148 = scmp.eq.s32.totalorder %s21, 1
    %p149 = por %p147, %p148
    %p150 = scmp.ne.s32.totalorder %s141, %s142
    %p151 = scmp.eq.s32.totalorder %s21, 0
    %p152 = por %p150, %p151
    %p153 = scmp.ne.s32.totalorder %s141, %s142
    %p154 = scmp.eq.s32.totalorder %s22, 1
    %p155 = por %p153, %p154
    %p157 = scmp.ne.s32.totalorder %s142, %s156
    %p158 = scmp.eq.s32.totalorder %s22, 0
    %p159 = por %p157, %p158
    %s161 = sadd.s32 %s160, 1
    %p164 = scmp.eq.s32.totalorder %s16, 1
    %p165 = scmp.ne.s32.totalorder %s160, %s162
    %p166 = scmp.eq.s32.totalorder %s16, 0
    %p167 = por %p165, %p166
    %p168 = scmp.ne.s32.totalorder %s160, %s162
    %p169 = scmp.eq.s32.totalorder %s21, 1
    %p170 = por %p168, %p169
    %p171 = scmp.ne.s32.totalorder %s162, %s163
    %p172 = scmp.eq.s32.totalorder %s21, 0
    %p173 = por %p171, %p172
    %p174 = scmp.ne.s32.totalorder %s162, %s163
    %p175 = scmp.eq.s32.totalorder %s22, 1
    %p176 = por %p174, %p175
    %p178 = scmp.ne.s32.totalorder %s163, %s177
    %p179 = scmp.eq.s32.totalorder %s22, 0
    %p180 = por %p178, %p179
    %s182 = sadd.s32 %s181, 1
    %p185 = scmp.eq.s32.totalorder %s16, 1
    %p186 = scmp.ne.s32.totalorder %s181, %s183
    %p187 = scmp.eq.s32.totalorder %s16, 0
    %p188 = por %p186, %p187
    %p189 = scmp.ne.s32.totalorder %s181, %s183
    %p190 = scmp.eq.s32.totalorder %s21, 1
    %p191 = por %p189, %p190
    %p192 = scmp.ne.s32.totalorder %s183, %s184
    %p193 = scmp.eq.s32.totalorder %s21, 0
    %p194 = por %p192, %p193
    %p195 = scmp.ne.s32.totalorder %s183, %s184
    %p196 = scmp.eq.s32.totalorder %s22, 1
    %p197 = por %p195, %p196
    %p199 = scmp.ne.s32.totalorder %s184, %s198
    %p200 = scmp.eq.s32.totalorder %s22, 0
    %p201 = por %p199, %p200
    %s203 = sadd.s32 %s202, 1
    %p206 = scmp.eq.s32.totalorder %s16, 1
    %p207 = scmp.ne.s32.totalorder %s202, %s204
    %p208 = scmp.eq.s32.totalorder %s16, 0
    %p209 = por %p207, %p208
    %p210 = scmp.ne.s32.totalorder %s202, %s204
    %p211 = scmp.eq.s32.totalorder %s21, 1
    %p212 = por %p210, %p211
    %p213 = scmp.ne.s32.totalorder %s204, %s205
    %p214 = scmp.eq.s32.totalorder %s21, 0
    %p215 = por %p213, %p214
    %p216 = scmp.ne.s32.totalorder %s204, %s205
    %p217 = scmp.eq.s32.totalorder %s22, 1
    %p218 = por %p216, %p217
    %p220 = scmp.ne.s32.totalorder %s205, %s219
    %p221 = scmp.eq.s32.totalorder %s22, 0
    %p222 = por %p220, %p221
    %s224 = sadd.s32 %s223, 1
    %p227 = scmp.eq.s32.totalorder %s16, 1
    %p228 = scmp.ne.s32.totalorder %s223, %s225
    %p229 = scmp.eq.s32.totalorder %s16, 0
    %p230 = por %p228, %p229
    %p231 = scmp.ne.s32.totalorder %s223, %s225
    %p232 = scmp.eq.s32.totalorder %s21, 1
    %p233 = por %p231, %p232
    %p234 = scmp.ne.s32.totalorder %s225, %s226
    %p235 = scmp.eq.s32.totalorder %s21, 0
    %p236 = por %p234, %p235
    %p237 = scmp.ne.s32.totalorder %s225, %s226
    %p238 = scmp.eq.s32.totalorder %s22, 1
    %p239 = por %p237, %p238
    %p241 = scmp.ne.s32.totalorder %s226, %s240
    %p242 = scmp.eq.s32.totalorder %s22, 0
    %p243 = por %p241, %p242
    %s244 = ssub.s32 %s16, %s23
    %p245 = scmp.eq.s32.totalorder %s244, 0
    %s247 = sadd.s32 %s246, 1
    %s248 = scalar_select %p245, %s246, %s247
    %p251 = pneg %p245
    %p252 = scmp.eq.s32.totalorder %s16, 1
    %p253 = por %p251, %p252
    %p254 = scmp.ne.s32.totalorder %s246, %s249
    %p255 = scmp.eq.s32.totalorder %s16, 0
    %p256 = por %p254, %p255
    %p257 = scmp.ne.s32.totalorder %s246, %s249
    %p258 = scmp.eq.s32.totalorder %s21, 1
    %p259 = por %p257, %p258
    %p260 = scmp.ne.s32.totalorder %s249, %s250
    %p261 = scmp.eq.s32.totalorder %s21, 0
    %p262 = por %p260, %p261
    %p263 = scmp.ne.s32.totalorder %s249, %s250
    %p264 = scmp.eq.s32.totalorder %s22, 1
    %p265 = por %p263, %p264
    %p267 = scmp.ne.s32.totalorder %s250, %s266
    %p268 = scmp.eq.s32.totalorder %s22, 0
    %p269 = por %p267, %p268
    %p270 = scmp.le.s32.totalorder 1, %s16
    %p271 = scmp.lt.s32.totalorder %s16, 3
    %p272 = pnand %p270, %p271
    %p273 = pneg %p272
    // Predicated region
    $region9: #{bottleneck_forward.1} parent=5 // pred_check
      _
    $region10: #{bottleneck_forward.1} parent=5 // pred_check_branch
      %275 = sbr.rel (%p272) target = $region12
    $region11: #{bottleneck_forward.1} parent=5 // pred_region
      %s276 = ssub.s32 %s16, 1
      // Predicated region
      $region13: #{bottleneck_forward.1} parent=11 // pred_check
        %p277 = pneg %p89
      $region14: #{bottleneck_forward.1} parent=11 // pred_check_branch
        %279 = sbr.rel (%p277) target = $region16
      $region15: #{bottleneck_forward.1} parent=11 // pred_region
        _
      $region16: #{bottleneck_forward.1} parent=11 // pred_fallthru
        _
      // Predicated region
      $region17: #{bottleneck_forward.1} parent=11 // pred_check
        %p280 = pneg %p110
      $region18: #{bottleneck_forward.1} parent=11 // pred_check_branch
        %282 = sbr.rel (%p280) target = $region20
      $region19: #{bottleneck_forward.1} parent=11 // pred_region
        _
      $region20: #{bottleneck_forward.1} parent=11 // pred_fallthru
        _
      // Predicated region
      $region21: #{bottleneck_forward.1} parent=11 // pred_check
        %p283 = pneg %p131
      $region22: #{bottleneck_forward.1} parent=11 // pred_check_branch
        %285 = sbr.rel (%p283) target = $region24
      $region23: #{bottleneck_forward.1} parent=11 // pred_region
        _
      $region24: #{bottleneck_forward.1} parent=11 // pred_fallthru
        _
      // Predicated region
      $region25: #{bottleneck_forward.1} parent=11 // pred_check
        %p286 = pneg %p152
      $region26: #{bottleneck_forward.1} parent=11 // pred_check_branch
        %288 = sbr.rel (%p286) target = $region28
      $region27: #{bottleneck_forward.1} parent=11 // pred_region
        _
      $region28: #{bottleneck_forward.1} parent=11 // pred_fallthru
        _
      // Predicated region
      $region29: #{bottleneck_forward.1} parent=11 // pred_check
        %p289 = pneg %p173
      $region30: #{bottleneck_forward.1} parent=11 // pred_check_branch
        %291 = sbr.rel (%p289) target = $region32
      $region31: #{bottleneck_forward.1} parent=11 // pred_region
        _
      $region32: #{bottleneck_forward.1} parent=11 // pred_fallthru
        _
      // Predicated region
      $region33: #{bottleneck_forward.1} parent=11 // pred_check
        %p292 = pneg %p194
      $region34: #{bottleneck_forward.1} parent=11 // pred_check_branch
        %294 = sbr.rel (%p292) target = $region36
      $region35: #{bottleneck_forward.1} parent=11 // pred_region
        _
      $region36: #{bottleneck_forward.1} parent=11 // pred_fallthru
        _
      // Predicated region
      $region37: #{bottleneck_forward.1} parent=11 // pred_check
        %p295 = pneg %p215
      $region38: #{bottleneck_forward.1} parent=11 // pred_check_branch
        %297 = sbr.rel (%p295) target = $region40
      $region39: #{bottleneck_forward.1} parent=11 // pred_region
        _
      $region40: #{bottleneck_forward.1} parent=11 // pred_fallthru
        _
      // Predicated region
      $region41: #{bottleneck_forward.1} parent=11 // pred_check
        %p298 = pneg %p236
      $region42: #{bottleneck_forward.1} parent=11 // pred_check_branch
        %300 = sbr.rel (%p298) target = $region44
      $region43: #{bottleneck_forward.1} parent=11 // pred_region
        _
      $region44: #{bottleneck_forward.1} parent=11 // pred_fallthru
        _
    $region12: #{bottleneck_forward.1} parent=5 // pred_fallthru
      _
    %p301 = scmp.lt.s32.totalorder %s16, 2
    // Predicated region
    $region45: #{bottleneck_forward.1} parent=5 // pred_check
      %p302 = pneg %p301
    $region46: #{bottleneck_forward.1} parent=5 // pred_check_branch
      %304 = sbr.rel (%p302) target = $region48
    $region47: #{bottleneck_forward.1} parent=5 // pred_region
      // Predicated region
      $region49: #{bottleneck_forward.1} parent=47 // pred_check
        %p305 = pneg %p36
      $region50: #{bottleneck_forward.1} parent=47 // pred_check_branch
        %307 = sbr.rel (%p305) target = $region52
      $region51: #{bottleneck_forward.1} parent=47 // pred_region
        %p308 = scmp.lt.s32.totalorder %s16, 1
        %s309 = scalar_select %p308, %s16, 1
        %s310 = smul.addr %s309, 32
        %s311 = smul.addr %s310, 8
        %s312 = scalar_lea.vmem %s0, %s311
      $region52: #{bottleneck_forward.1} parent=47 // pred_fallthru
        _
      // Predicated region
      $region53: #{bottleneck_forward.1} parent=47 // pred_check
        %p313 = pneg %p62
      $region54: #{bottleneck_forward.1} parent=47 // pred_check_branch
        %315 = sbr.rel (%p313) target = $region56
      $region55: #{bottleneck_forward.1} parent=47 // pred_region
        %p316 = scmp.lt.s32.totalorder %s16, 1
        %s317 = scalar_select %p316, %s16, 1
        %s318 = smul.addr %s317, 2
        %s319 = smul.addr %s318, 4
        %s320 = scalar_lea.vmem %s1, %s319
      $region56: #{bottleneck_forward.1} parent=47 // pred_fallthru
        _
    $region48: #{bottleneck_forward.1} parent=5 // pred_fallthru
      _
    %p321 = scmp.le.s32.totalorder 1, %s16
    %p322 = scmp.lt.s32.totalorder %s16, 3
    %p323 = pnand %p321, %p322
    %p324 = pneg %p323
    // Predicated region
    $region57: #{bottleneck_forward.1} parent=5 // pred_check
      _
    $region58: #{bottleneck_forward.1} parent=5 // pred_check_branch
      %326 = sbr.rel (%p323) target = $region60
    $region59: #{bottleneck_forward.1} parent=5 // pred_region
      %s327 = ssub.s32 %s16, 1
      %p328 = scmp.lt.s32.totalorder %s21, 1
      %s329 = scalar_select %p328, %s21, 1
      %s330 = smul.addr %s329, 32
      %s331 = smul.addr %s330, 8
      %s332 = scalar_lea.vmem %s0, %s331
      %p333 = pneg %p42
      %p334 = pneg %p39
      %p335 = scmp.lt.s32.totalorder %s21, 1
      %s336 = scalar_select %p335, %s21, 1
      %s337 = smul.addr %s336, 2
      %s338 = smul.addr %s337, 4
      %s339 = scalar_lea.vmem %s1, %s338
      %p340 = pneg %p68
      %p341 = pneg %p65
      %p342 = pneg %p89
      %p343 = pneg %p86
      %p344 = pneg %p110
      %p345 = pneg %p107
      %p346 = pneg %p131
      %p347 = pneg %p128
      %p348 = pneg %p152
      %p349 = pneg %p149
      %p350 = pneg %p173
      %p351 = pneg %p170
      %p352 = pneg %p194
      %p353 = pneg %p191
      %p354 = pneg %p215
      %p355 = pneg %p212
      %p356 = pneg %p236
      %p357 = pneg %p233
      %p358 = pneg %p262
      %p359 = pneg %p259
      %p360 = scmp.lt.s32.totalorder %s21, 1
      %s361 = scalar_select %p360, %s21, 1
      %s362 = smul.addr %s361, 10
      %s363 = smul.addr %s362, 8
      %s364 = scalar_lea.vmem %s10, %s363
      %p365 = scmp.lt.s32.totalorder %s21, 1
      %s366 = scalar_select %p365, %s21, 1
      %s367 = smul.addr %s366, 32
      %s368 = smul.addr %s367, 8
      %s369 = scalar_lea.vmem %s0, %s368
      %p370 = scmp.lt.s32.totalorder %s21, 1
      %s371 = scalar_select %p370, %s21, 1
      %s372 = smul.addr %s371, 2
      %s373 = smul.addr %s372, 4
      %s374 = scalar_lea.vmem %s1, %s373
      %p375 = scmp.lt.s32.totalorder %s21, 1
      %s376 = scalar_select %p375, %s21, 1
      %s377 = smul.addr %s376, 10
      %s378 = smul.addr %s377, 8
      %s379 = scalar_lea.vmem %s10, %s378
      %v380 = vld [vmem:[%s369] sm:$0xff]
      %v381 = vld [vmem:[%s369 + $0x8] sm:$0xff]
      %v382 = vld [vmem:[%s369 + $0x10] sm:$0xff]
      %v383 = vld [vmem:[%s369 + $0x18] sm:$0xff]
      %v384 = vld [vmem:[%s369 + $0x20] sm:$0xff]
      %v385 = vld [vmem:[%s369 + $0x28] sm:$0xff]
      %v386 = vld [vmem:[%s369 + $0x30] sm:$0xff]
      %v387 = vld [vmem:[%s369 + $0x38] sm:$0xff]
      %v388 = vld [vmem:[%s369 + $0x40] sm:$0xff]
      %v389 = vld [vmem:[%s369 + $0x48] sm:$0xff]
      %v390 = vld [vmem:[%s369 + $0x50] sm:$0xff]
      %v391 = vld [vmem:[%s369 + $0x58] sm:$0xff]
      %v392 = vld [vmem:[%s369 + $0x60] sm:$0xff]
      %v393 = vld [vmem:[%s369 + $0x68] sm:$0xff]
      %v394 = vld [vmem:[%s369 + $0x70] sm:$0xff]
      %v395 = vld [vmem:[%s369 + $0x78] sm:$0xff]
      %v396 = vld [vmem:[%s369 + $0x80] sm:$0xff]
      %v397 = vld [vmem:[%s369 + $0x88] sm:$0xff]
      %v398 = vld [vmem:[%s369 + $0x90] sm:$0xff]
      %v399 = vld [vmem:[%s369 + $0x98] sm:$0xff]
      %v400 = vld [vmem:[%s369 + $0xa0] sm:$0xff]
      %v401 = vld [vmem:[%s369 + $0xa8] sm:$0xff]
      %v402 = vld [vmem:[%s369 + $0xb0] sm:$0xff]
      %v403 = vld [vmem:[%s369 + $0xb8] sm:$0xff]
      %v404 = vld [vmem:[%s369 + $0xc0] sm:$0xff]
      %v405 = vld [vmem:[%s369 + $0xc8] sm:$0xff]
      %v406 = vld [vmem:[%s369 + $0xd0] sm:$0xff]
      %v407 = vld [vmem:[%s369 + $0xd8] sm:$0xff]
      %v408 = vld [vmem:[%s369 + $0xe0] sm:$0xff]
      %v409 = vld [vmem:[%s369 + $0xe8] sm:$0xff]
      %v410 = vld [vmem:[%s369 + $0xf0] sm:$0xff]
      %v411 = vld [vmem:[%s369 + $0xf8] sm:$0xff]
      %v412 = vld [vmem:[%s2] sm:$0x1]
      %v414 = vlaneseq
      %v415 = vshrl.u32 %v414, 7
      %v416 = vsub.s32 0, %v415
      %v417 = vrot.slane %v412, %v416
      %v419 = vmul.f32 %v380, %v417
      %v420 = vmul.f32 %v381, %v417
      %v421 = vmul.f32 %v382, %v417
      %v422 = vmul.f32 %v383, %v417
      %v423 = vmul.f32 %v384, %v417
      %v424 = vmul.f32 %v385, %v417
      %v425 = vmul.f32 %v386, %v417
      %v426 = vmul.f32 %v387, %v417
      %v427 = vmul.f32 %v388, %v417
      %v428 = vmul.f32 %v389, %v417
      %v429 = vmul.f32 %v390, %v417
      %v430 = vmul.f32 %v391, %v417
      %v431 = vmul.f32 %v392, %v417
      %v432 = vmul.f32 %v393, %v417
      %v433 = vmul.f32 %v394, %v417
      %v434 = vmul.f32 %v395, %v417
      %v435 = vmul.f32 %v396, %v417
      %v436 = vmul.f32 %v397, %v417
      %v437 = vmul.f32 %v398, %v417
      %v438 = vmul.f32 %v399, %v417
      %v439 = vmul.f32 %v400, %v417
      %v440 = vmul.f32 %v401, %v417
      %v441 = vmul.f32 %v402, %v417
      %v442 = vmul.f32 %v403, %v417
      %v443 = vmul.f32 %v404, %v417
      %v444 = vmul.f32 %v405, %v417
      %v445 = vmul.f32 %v406, %v417
      %v446 = vmul.f32 %v407, %v417
      %v447 = vmul.f32 %v408, %v417
      %v448 = vmul.f32 %v409, %v417
      %v449 = vmul.f32 %v410, %v417
      %v450 = vmul.f32 %v411, %v417
      %v451 = vld [vmem:[%s3] sm:$0x1]
      %v453 = vlaneseq
      %v454 = vshrl.u32 %v453, 7
      %v455 = vsub.s32 0, %v454
      %v456 = vrot.slane %v451, %v455
      %v458 = vadd.f32 %v419, %v456
      %v459 = vadd.f32 %v420, %v456
      %v460 = vadd.f32 %v421, %v456
      %v461 = vadd.f32 %v422, %v456
      %v462 = vadd.f32 %v423, %v456
      %v463 = vadd.f32 %v424, %v456
      %v464 = vadd.f32 %v425, %v456
      %v465 = vadd.f32 %v426, %v456
      %v466 = vadd.f32 %v427, %v456
      %v467 = vadd.f32 %v428, %v456
      %v468 = vadd.f32 %v429, %v456
      %v469 = vadd.f32 %v430, %v456
      %v470 = vadd.f32 %v431, %v456
      %v471 = vadd.f32 %v432, %v456
      %v472 = vadd.f32 %v433, %v456
      %v473 = vadd.f32 %v434, %v456
      %v474 = vadd.f32 %v435, %v456
      %v475 = vadd.f32 %v436, %v456
      %v476 = vadd.f32 %v437, %v456
      %v477 = vadd.f32 %v438, %v456
      %v478 = vadd.f32 %v439, %v456
      %v479 = vadd.f32 %v440, %v456
      %v480 = vadd.f32 %v441, %v456
      %v481 = vadd.f32 %v442, %v456
      %v482 = vadd.f32 %v443, %v456
      %v483 = vadd.f32 %v444, %v456
      %v484 = vadd.f32 %v445, %v456
      %v485 = vadd.f32 %v446, %v456
      %v486 = vadd.f32 %v447, %v456
      %v487 = vadd.f32 %v448, %v456
      %v488 = vadd.f32 %v449, %v456
      %v489 = vadd.f32 %v450, %v456
      %v490 = vmax.f32 %v458, 0.0
      %v491 = vmax.f32 %v459, 0.0
      %v492 = vmax.f32 %v460, 0.0
      %v493 = vmax.f32 %v461, 0.0
      %v494 = vmax.f32 %v462, 0.0
      %v495 = vmax.f32 %v463, 0.0
      %v496 = vmax.f32 %v464, 0.0
      %v497 = vmax.f32 %v465, 0.0
      %v498 = vmax.f32 %v466, 0.0
      %v499 = vmax.f32 %v467, 0.0
      %v500 = vmax.f32 %v468, 0.0
      %v501 = vmax.f32 %v469, 0.0
      %v502 = vmax.f32 %v470, 0.0
      %v503 = vmax.f32 %v471, 0.0
      %v504 = vmax.f32 %v472, 0.0
      %v505 = vmax.f32 %v473, 0.0
      %v506 = vmax.f32 %v474, 0.0
      %v507 = vmax.f32 %v475, 0.0
      %v508 = vmax.f32 %v476, 0.0
      %v509 = vmax.f32 %v477, 0.0
      %v510 = vmax.f32 %v478, 0.0
      %v511 = vmax.f32 %v479, 0.0
      %v512 = vmax.f32 %v480, 0.0
      %v513 = vmax.f32 %v481, 0.0
      %v514 = vmax.f32 %v482, 0.0
      %v515 = vmax.f32 %v483, 0.0
      %v516 = vmax.f32 %v484, 0.0
      %v517 = vmax.f32 %v485, 0.0
      %v518 = vmax.f32 %v486, 0.0
      %v519 = vmax.f32 %v487, 0.0
      %v520 = vmax.f32 %v488, 0.0
      %v521 = vmax.f32 %v489, 0.0
      %v522 = vld [vmem:[%s4] sm:$0xf]
      %vm523 = vcmask 31744
      %v525 = vsel %vm523, %v490, 0
      %v528 = vsel %vm523, %v491, 0
      %v531 = vsel %vm523, %v492, 0
      %v534 = vsel %vm523, %v493, 0
      %v537 = vsel %vm523, %v494, 0
      %v540 = vsel %vm523, %v495, 0
      %v543 = vsel %vm523, %v496, 0
      %v546 = vsel %vm523, %v497, 0
      %v549 = vsel %vm523, %v498, 0
      %v552 = vsel %vm523, %v499, 0
      %v555 = vsel %vm523, %v500, 0
      %v558 = vsel %vm523, %v501, 0
      %v561 = vsel %vm523, %v502, 0
      %v564 = vsel %vm523, %v503, 0
      %v567 = vsel %vm523, %v504, 0
      %v570 = vsel %vm523, %v505, 0
      %v573 = vsel %vm523, %v506, 0
      %v576 = vsel %vm523, %v507, 0
      %v579 = vsel %vm523, %v508, 0
      %v582 = vsel %vm523, %v509, 0
      %v585 = vsel %vm523, %v510, 0
      %v588 = vsel %vm523, %v511, 0
      %v591 = vsel %vm523, %v512, 0
      %v594 = vsel %vm523, %v513, 0
      %v597 = vsel %vm523, %v514, 0
      %v600 = vsel %vm523, %v515, 0
      %v603 = vsel %vm523, %v516, 0
      %v606 = vsel %vm523, %v517, 0
      %v609 = vsel %vm523, %v518, 0
      %v612 = vsel %vm523, %v519, 0
      %v615 = vsel %vm523, %v520, 0
      %v618 = vsel %vm523, %v521, 0
      %vm620 = vcmask 1043456
      %v622 = vsel %vm620, %v522, 0
      %624 = vmatprep.subr.mxu0 0.0
      %625 = vmatpush1.msra.mxu0 0.0
      %626 = vmatprep.subr.mxu0 0.0
      %627 = vmatpush1.msra.mxu0 0.0
      %628 = vmatprep.subr.mxu0 0.0
      %629 = vmatpush1.msra.mxu0 0.0
      %630 = vmatprep.subr.mxu0 0.0
      %631 = vmatpush1.msra.mxu0 0.0
      %632 = vmatprep.subr.mxu0 0.0
      %633 = vmatpush1.msra.mxu0 0.0
      %634 = vmatprep.subr.mxu0 0.0
      %635 = vmatpush1.msra.mxu0 0.0
      %636 = vmatprep.subr.mxu0 0.0
      %637 = vmatpush1.msra.mxu0 0.0
      %638 = vmatprep.subr.mxu0 0.0
      %639 = vmatpush1.msra.mxu0 0.0
      %640 = vmatprep.subr.mxu0 0.0
      %641 = vmatpush1.msra.mxu0 0.0
      %642 = vmatprep.subr.mxu0 0.0
      %643 = vmatpush1.msra.mxu0 0.0
      %644 = vmatprep.subr.mxu0 0.0
      %645 = vmatpush1.msra.mxu0 0.0
      %646 = vmatprep.subr.mxu0 0.0
      %647 = vmatpush1.msra.mxu0 0.0
      %648 = vmatprep.subr.mxu0 0.0
      %649 = vmatpush1.msra.mxu0 0.0
      %650 = vmatprep.subr.mxu0 0.0
      %651 = vmatpush1.msra.mxu0 0.0
      %652 = vmatprep.subr.mxu0 0.0
      %653 = vmatpush1.msra.mxu0 0.0
      %654 = vmatprep.subr.mxu0 0.0
      %655 = vmatpush1.msra.mxu0 %v622
      %656 = vmatprep.subr.mxu0 0.0
      %657 = vmatpush2.msra.mxu0 0.0
      %658 = vmatprep.subr.mxu0 0.0
      %659 = vmatpush2.msra.mxu0 0.0
      %660 = vmatprep.subr.mxu0 0.0
      %661 = vmatpush2.msra.mxu0 0.0
      %662 = vmatprep.subr.mxu0 0.0
      %663 = vmatpush2.msra.mxu0 0.0
      %664 = vmatprep.subr.mxu0 0.0
      %665 = vmatpush2.msra.mxu0 0.0
      %666 = vmatprep.subr.mxu0 0.0
      %667 = vmatpush2.msra.mxu0 0.0
      %668 = vmatprep.subr.mxu0 0.0
      %669 = vmatpush2.msra.mxu0 0.0
      %670 = vmatprep.subr.mxu0 0.0
      %671 = vmatpush2.msra.mxu0 0.0
      %672 = vmatprep.subr.mxu0 0.0
      %673 = vmatpush2.msra.mxu0 0.0
      %674 = vmatprep.subr.mxu0 0.0
      %675 = vmatpush2.msra.mxu0 0.0
      %676 = vmatprep.subr.mxu0 0.0
      %677 = vmatpush2.msra.mxu0 0.0
      %678 = vmatprep.subr.mxu0 0.0
      %679 = vmatpush2.msra.mxu0 0.0
      %680 = vmatprep.subr.mxu0 0.0
      %681 = vmatpush2.msra.mxu0 0.0
      %682 = vmatprep.subr.mxu0 0.0
      %683 = vmatpush2.msra.mxu0 0.0
      %684 = vmatprep.subr.mxu0 0.0
      %685 = vmatpush2.msra.mxu0 0.0
      %686 = vmatprep.subr.mxu0 0.0
      %687 = vmatpush2.msra.mxu0 0.0
      %688 = vmatprep.mubr.f32.mxu0 0.0
      %689 = vmatmul.mubr.f32.gmra.mxu0 %v525
      %v690 = vpop.f32.mrf.mxu0
      %v691 = vadd.f32 0.0, %v690
      %v692 = vpop.f32.mrf.mxu0
      %693 = vmatprep.mubr.f32.mxu0 0.0
      %694 = vmatmul.mubr.f32.gmra.mxu0 %v528
      %v695 = vpop.f32.mrf.mxu0
      %v696 = vadd.f32 0.0, %v695
      %v697 = vpop.f32.mrf.mxu0
      %698 = vmatprep.mubr.f32.mxu0 0.0
      %699 = vmatmul.mubr.f32.gmra.mxu0 %v531
      %v700 = vpop.f32.mrf.mxu0
      %v701 = vadd.f32 0.0, %v700
      %v702 = vpop.f32.mrf.mxu0
      %703 = vmatprep.mubr.f32.mxu0 0.0
      %704 = vmatmul.mubr.f32.gmra.mxu0 %v534
      %v705 = vpop.f32.mrf.mxu0
      %v706 = vadd.f32 0.0, %v705
      %v707 = vpop.f32.mrf.mxu0
      %708 = vmatprep.mubr.f32.mxu0 0.0
      %709 = vmatmul.mubr.f32.gmra.mxu0 %v537
      %v710 = vpop.f32.mrf.mxu0
      %v711 = vadd.f32 0.0, %v710
      %v712 = vpop.f32.mrf.mxu0
      %713 = vmatprep.mubr.f32.mxu0 0.0
      %714 = vmatmul.mubr.f32.gmra.mxu0 %v540
      %v715 = vpop.f32.mrf.mxu0
      %v716 = vadd.f32 0.0, %v715
      %v717 = vpop.f32.mrf.mxu0
      %718 = vmatprep.mubr.f32.mxu0 0.0
      %719 = vmatmul.mubr.f32.gmra.mxu0 %v543
      %v720 = vpop.f32.mrf.mxu0
      %v721 = vadd.f32 0.0, %v720
      %v722 = vpop.f32.mrf.mxu0
      %723 = vmatprep.mubr.f32.mxu0 0.0
      %724 = vmatmul.mubr.f32.gmra.mxu0 %v546
      %v725 = vpop.f32.mrf.mxu0
      %v726 = vadd.f32 0.0, %v725
      %v727 = vpop.f32.mrf.mxu0
      %728 = vmatprep.mubr.f32.mxu0 0.0
      %729 = vmatmul.mubr.f32.gmra.mxu0 %v549
      %v730 = vpop.f32.mrf.mxu0
      %v731 = vadd.f32 0.0, %v730
      %v732 = vpop.f32.mrf.mxu0
      %733 = vmatprep.mubr.f32.mxu0 0.0
      %734 = vmatmul.mubr.f32.gmra.mxu0 %v552
      %v735 = vpop.f32.mrf.mxu0
      %v736 = vadd.f32 0.0, %v735
      %v737 = vpop.f32.mrf.mxu0
      %738 = vmatprep.mubr.f32.mxu0 0.0
      %739 = vmatmul.mubr.f32.gmra.mxu0 %v555
      %v740 = vpop.f32.mrf.mxu0
      %v741 = vadd.f32 0.0, %v740
      %v742 = vpop.f32.mrf.mxu0
      %743 = vmatprep.mubr.f32.mxu0 0.0
      %744 = vmatmul.mubr.f32.gmra.mxu0 %v558
      %v745 = vpop.f32.mrf.mxu0
      %v746 = vadd.f32 0.0, %v745
      %v747 = vpop.f32.mrf.mxu0
      %748 = vmatprep.mubr.f32.mxu0 0.0
      %749 = vmatmul.mubr.f32.gmra.mxu0 %v561
      %v750 = vpop.f32.mrf.mxu0
      %v751 = vadd.f32 0.0, %v750
      %v752 = vpop.f32.mrf.mxu0
      %753 = vmatprep.mubr.f32.mxu0 0.0
      %754 = vmatmul.mubr.f32.gmra.mxu0 %v564
      %v755 = vpop.f32.mrf.mxu0
      %v756 = vadd.f32 0.0, %v755
      %v757 = vpop.f32.mrf.mxu0
      %758 = vmatprep.mubr.f32.mxu0 0.0
      %759 = vmatmul.mubr.f32.gmra.mxu0 %v567
      %v760 = vpop.f32.mrf.mxu0
      %v761 = vadd.f32 0.0, %v760
      %v762 = vpop.f32.mrf.mxu0
      %763 = vmatprep.mubr.f32.mxu0 0.0
      %764 = vmatmul.mubr.f32.gmra.mxu0 %v570
      %v765 = vpop.f32.mrf.mxu0
      %v766 = vadd.f32 0.0, %v765
      %v767 = vpop.f32.mrf.mxu0
      %768 = vmatprep.mubr.f32.mxu0 0.0
      %769 = vmatmul.mubr.f32.gmra.mxu0 %v573
      %v770 = vpop.f32.mrf.mxu0
      %v771 = vadd.f32 0.0, %v770
      %v772 = vpop.f32.mrf.mxu0
      %773 = vmatprep.mubr.f32.mxu0 0.0
      %774 = vmatmul.mubr.f32.gmra.mxu0 %v576
      %v775 = vpop.f32.mrf.mxu0
      %v776 = vadd.f32 0.0, %v775
      %v777 = vpop.f32.mrf.mxu0
      %778 = vmatprep.mubr.f32.mxu0 0.0
      %779 = vmatmul.mubr.f32.gmra.mxu0 %v579
      %v780 = vpop.f32.mrf.mxu0
      %v781 = vadd.f32 0.0, %v780
      %v782 = vpop.f32.mrf.mxu0
      %783 = vmatprep.mubr.f32.mxu0 0.0
      %784 = vmatmul.mubr.f32.gmra.mxu0 %v582
      %v785 = vpop.f32.mrf.mxu0
      %v786 = vadd.f32 0.0, %v785
      %v787 = vpop.f32.mrf.mxu0
      %788 = vmatprep.mubr.f32.mxu0 0.0
      %789 = vmatmul.mubr.f32.gmra.mxu0 %v585
      %v790 = vpop.f32.mrf.mxu0
      %v791 = vadd.f32 0.0, %v790
      %v792 = vpop.f32.mrf.mxu0
      %793 = vmatprep.mubr.f32.mxu0 0.0
      %794 = vmatmul.mubr.f32.gmra.mxu0 %v588
      %v795 = vpop.f32.mrf.mxu0
      %v796 = vadd.f32 0.0, %v795
      %v797 = vpop.f32.mrf.mxu0
      %798 = vmatprep.mubr.f32.mxu0 0.0
      %799 = vmatmul.mubr.f32.gmra.mxu0 %v591
      %v800 = vpop.f32.mrf.mxu0
      %v801 = vadd.f32 0.0, %v800
      %v802 = vpop.f32.mrf.mxu0
      %803 = vmatprep.mubr.f32.mxu0 0.0
      %804 = vmatmul.mubr.f32.gmra.mxu0 %v594
      %v805 = vpop.f32.mrf.mxu0
      %v806 = vadd.f32 0.0, %v805
      %v807 = vpop.f32.mrf.mxu0
      %808 = vmatprep.mubr.f32.mxu0 0.0
      %809 = vmatmul.mubr.f32.gmra.mxu0 %v597
      %v810 = vpop.f32.mrf.mxu0
      %v811 = vadd.f32 0.0, %v810
      %v812 = vpop.f32.mrf.mxu0
      %813 = vmatprep.mubr.f32.mxu0 0.0
      %814 = vmatmul.mubr.f32.gmra.mxu0 %v600
      %v815 = vpop.f32.mrf.mxu0
      %v816 = vadd.f32 0.0, %v815
      %v817 = vpop.f32.mrf.mxu0
      %818 = vmatprep.mubr.f32.mxu0 0.0
      %819 = vmatmul.mubr.f32.gmra.mxu0 %v603
      %v820 = vpop.f32.mrf.mxu0
      %v821 = vadd.f32 0.0, %v820
      %v822 = vpop.f32.mrf.mxu0
      %823 = vmatprep.mubr.f32.mxu0 0.0
      %824 = vmatmul.mubr.f32.gmra.mxu0 %v606
      %v825 = vpop.f32.mrf.mxu0
      %v826 = vadd.f32 0.0, %v825
      %v827 = vpop.f32.mrf.mxu0
      %828 = vmatprep.mubr.f32.mxu0 0.0
      %829 = vmatmul.mubr.f32.gmra.mxu0 %v609
      %v830 = vpop.f32.mrf.mxu0
      %v831 = vadd.f32 0.0, %v830
      %v832 = vpop.f32.mrf.mxu0
      %833 = vmatprep.mubr.f32.mxu0 0.0
      %834 = vmatmul.mubr.f32.gmra.mxu0 %v612
      %v835 = vpop.f32.mrf.mxu0
      %v836 = vadd.f32 0.0, %v835
      %v837 = vpop.f32.mrf.mxu0
      %838 = vmatprep.mubr.f32.mxu0 0.0
      %839 = vmatmul.mubr.f32.gmra.mxu0 %v615
      %v840 = vpop.f32.mrf.mxu0
      %v841 = vadd.f32 0.0, %v840
      %v842 = vpop.f32.mrf.mxu0
      %843 = vmatprep.mubr.f32.mxu0 0.0
      %844 = vmatmul.mubr.f32.gmra.mxu0 %v618
      %v845 = vpop.f32.mrf.mxu0
      %v846 = vadd.f32 0.0, %v845
      %v847 = vpop.f32.mrf.mxu0
      %848 = vdwg.mxu0
      %v849 = vld [vmem:[%s5] sm:$0x1]
      %v851 = vlaneseq
      %v852 = vshrl.u32 %v851, 7
      %v853 = vsub.s32 0, %v852
      %v854 = vrot.slane %v849, %v853
      %v856 = vmul.f32 %v691, %v854
      %v857 = vmul.f32 %v696, %v854
      %v858 = vmul.f32 %v701, %v854
      %v859 = vmul.f32 %v706, %v854
      %v860 = vmul.f32 %v711, %v854
      %v861 = vmul.f32 %v716, %v854
      %v862 = vmul.f32 %v721, %v854
      %v863 = vmul.f32 %v726, %v854
      %v864 = vmul.f32 %v731, %v854
      %v865 = vmul.f32 %v736, %v854
      %v866 = vmul.f32 %v741, %v854
      %v867 = vmul.f32 %v746, %v854
      %v868 = vmul.f32 %v751, %v854
      %v869 = vmul.f32 %v756, %v854
      %v870 = vmul.f32 %v761, %v854
      %v871 = vmul.f32 %v766, %v854
      %v872 = vmul.f32 %v771, %v854
      %v873 = vmul.f32 %v776, %v854
      %v874 = vmul.f32 %v781, %v854
      %v875 = vmul.f32 %v786, %v854
      %v876 = vmul.f32 %v791, %v854
      %v877 = vmul.f32 %v796, %v854
      %v878 = vmul.f32 %v801, %v854
      %v879 = vmul.f32 %v806, %v854
      %v880 = vmul.f32 %v811, %v854
      %v881 = vmul.f32 %v816, %v854
      %v882 = vmul.f32 %v821, %v854
      %v883 = vmul.f32 %v826, %v854
      %v884 = vmul.f32 %v831, %v854
      %v885 = vmul.f32 %v836, %v854
      %v886 = vmul.f32 %v841, %v854
      %v887 = vmul.f32 %v846, %v854
      %v888 = vld [vmem:[%s6] sm:$0x1]
      %v890 = vlaneseq
      %v891 = vshrl.u32 %v890, 7
      %v892 = vsub.s32 0, %v891
      %v893 = vrot.slane %v888, %v892
      %v895 = vadd.f32 %v856, %v893
      %v896 = vadd.f32 %v857, %v893
      %v897 = vadd.f32 %v858, %v893
      %v898 = vadd.f32 %v859, %v893
      %v899 = vadd.f32 %v860, %v893
      %v900 = vadd.f32 %v861, %v893
      %v901 = vadd.f32 %v862, %v893
      %v902 = vadd.f32 %v863, %v893
      %v903 = vadd.f32 %v864, %v893
      %v904 = vadd.f32 %v865, %v893
      %v905 = vadd.f32 %v866, %v893
      %v906 = vadd.f32 %v867, %v893
      %v907 = vadd.f32 %v868, %v893
      %v908 = vadd.f32 %v869, %v893
      %v909 = vadd.f32 %v870, %v893
      %v910 = vadd.f32 %v871, %v893
      %v911 = vadd.f32 %v872, %v893
      %v912 = vadd.f32 %v873, %v893
      %v913 = vadd.f32 %v874, %v893
      %v914 = vadd.f32 %v875, %v893
      %v915 = vadd.f32 %v876, %v893
      %v916 = vadd.f32 %v877, %v893
      %v917 = vadd.f32 %v878, %v893
      %v918 = vadd.f32 %v879, %v893
      %v919 = vadd.f32 %v880, %v893
      %v920 = vadd.f32 %v881, %v893
      %v921 = vadd.f32 %v882, %v893
      %v922 = vadd.f32 %v883, %v893
      %v923 = vadd.f32 %v884, %v893
      %v924 = vadd.f32 %v885, %v893
      %v925 = vadd.f32 %v886, %v893
      %v926 = vadd.f32 %v887, %v893
      %v927 = vmax.f32 %v895, 0.0
      %v928 = vmax.f32 %v896, 0.0
      %v929 = vmax.f32 %v897, 0.0
      %v930 = vmax.f32 %v898, 0.0
      %v931 = vmax.f32 %v899, 0.0
      %v932 = vmax.f32 %v900, 0.0
      %v933 = vmax.f32 %v901, 0.0
      %v934 = vmax.f32 %v902, 0.0
      %v935 = vmax.f32 %v903, 0.0
      %v936 = vmax.f32 %v904, 0.0
      %v937 = vmax.f32 %v905, 0.0
      %v938 = vmax.f32 %v906, 0.0
      %v939 = vmax.f32 %v907, 0.0
      %v940 = vmax.f32 %v908, 0.0
      %v941 = vmax.f32 %v909, 0.0
      %v942 = vmax.f32 %v910, 0.0
      %v943 = vmax.f32 %v911, 0.0
      %v944 = vmax.f32 %v912, 0.0
      %v945 = vmax.f32 %v913, 0.0
      %v946 = vmax.f32 %v914, 0.0
      %v947 = vmax.f32 %v915, 0.0
      %v948 = vmax.f32 %v916, 0.0
      %v949 = vmax.f32 %v917, 0.0
      %v950 = vmax.f32 %v918, 0.0
      %v951 = vmax.f32 %v919, 0.0
      %v952 = vmax.f32 %v920, 0.0
      %v953 = vmax.f32 %v921, 0.0
      %v954 = vmax.f32 %v922, 0.0
      %v955 = vmax.f32 %v923, 0.0
      %v956 = vmax.f32 %v924, 0.0
      %v957 = vmax.f32 %v925, 0.0
      %v958 = vmax.f32 %v926, 0.0
      %vm991 = vcmask 1040384
      %v992 = vrot.slane %v927, 7
      %v993 = vrot.slane %v928, 7
      %v994 = vsel %vm991, %v992, %v993
      %v995 = vrot.slane %v929, 7
      %v996 = vsel %vm991, %v993, %v995
      %v997 = vrot.slane %v930, 7
      %v998 = vsel %vm991, %v995, %v997
      %v999 = vrot.slane %v931, 7
      %v1000 = vsel %vm991, %v997, %v999
      %v1001 = vrot.slane %v932, 7
      %v1002 = vsel %vm991, %v999, %v1001
      %v1003 = vrot.slane %v933, 7
      %v1004 = vsel %vm991, %v1001, %v1003
      %v1005 = vrot.slane %v934, 7
      %v1006 = vsel %vm991, %v1003, %v1005
      %v1007 = vrot.slane %v935, 7
      %v1008 = vsel %vm991, %v1005, %v1007
      %v1009 = vrot.slane %v936, 7
      %v1010 = vsel %vm991, %v1007, %v1009
      %v1011 = vrot.slane %v937, 7
      %v1012 = vsel %vm991, %v1009, %v1011
      %v1013 = vrot.slane %v938, 7
      %v1014 = vsel %vm991, %v1011, %v1013
      %v1015 = vrot.slane %v939, 7
      %v1016 = vsel %vm991, %v1013, %v1015
      %v1017 = vrot.slane %v940, 7
      %v1018 = vsel %vm991, %v1015, %v1017
      %v1019 = vrot.slane %v941, 7
      %v1020 = vsel %vm991, %v1017, %v1019
      %v1021 = vrot.slane %v942, 7
      %v1022 = vsel %vm991, %v1019, %v1021
      %v1023 = vrot.slane %v943, 7
      %v1024 = vsel %vm991, %v1021, %v1023
      %v1025 = vrot.slane %v944, 7
      %v1026 = vsel %vm991, %v1023, %v1025
      %v1027 = vrot.slane %v945, 7
      %v1028 = vsel %vm991, %v1025, %v1027
      %v1029 = vrot.slane %v946, 7
      %v1030 = vsel %vm991, %v1027, %v1029
      %v1031 = vrot.slane %v947, 7
      %v1032 = vsel %vm991, %v1029, %v1031
      %v1033 = vrot.slane %v948, 7
      %v1034 = vsel %vm991, %v1031, %v1033
      %v1035 = vrot.slane %v949, 7
      %v1036 = vsel %vm991, %v1033, %v1035
      %v1037 = vrot.slane %v950, 7
      %v1038 = vsel %vm991, %v1035, %v1037
      %v1039 = vrot.slane %v951, 7
      %v1040 = vsel %vm991, %v1037, %v1039
      %v1041 = vrot.slane %v952, 7
      %v1042 = vsel %vm991, %v1039, %v1041
      %v1043 = vrot.slane %v953, 7
      %v1044 = vsel %vm991, %v1041, %v1043
      %v1045 = vrot.slane %v954, 7
      %v1046 = vsel %vm991, %v1043, %v1045
      %v1047 = vrot.slane %v955, 7
      %v1048 = vsel %vm991, %v1045, %v1047
      %v1049 = vrot.slane %v956, 7
      %v1050 = vsel %vm991, %v1047, %v1049
      %v1051 = vrot.slane %v957, 7
      %v1052 = vsel %vm991, %v1049, %v1051
      %v1053 = vrot.slane %v958, 7
      %v1054 = vsel %vm991, %v1051, %v1053
      %v1087 = vsel %vm991, 0.0, %v992
      %vm1088 = vcmask 1046528
      %v1089 = vrot.slane %v927, 1
      %v1090 = vrot.slane %v928, 1
      %v1091 = vsel %vm1088, %v1089, %v1090
      %v1092 = vrot.slane %v929, 1
      %v1093 = vsel %vm1088, %v1090, %v1092
      %v1094 = vrot.slane %v930, 1
      %v1095 = vsel %vm1088, %v1092, %v1094
      %v1096 = vrot.slane %v931, 1
      %v1097 = vsel %vm1088, %v1094, %v1096
      %v1098 = vrot.slane %v932, 1
      %v1099 = vsel %vm1088, %v1096, %v1098
      %v1100 = vrot.slane %v933, 1
      %v1101 = vsel %vm1088, %v1098, %v1100
      %v1102 = vrot.slane %v934, 1
      %v1103 = vsel %vm1088, %v1100, %v1102
      %v1104 = vrot.slane %v935, 1
      %v1105 = vsel %vm1088, %v1102, %v1104
      %v1106 = vrot.slane %v936, 1
      %v1107 = vsel %vm1088, %v1104, %v1106
      %v1108 = vrot.slane %v937, 1
      %v1109 = vsel %vm1088, %v1106, %v1108
      %v1110 = vrot.slane %v938, 1
      %v1111 = vsel %vm1088, %v1108, %v1110
      %v1112 = vrot.slane %v939, 1
      %v1113 = vsel %vm1088, %v1110, %v1112
      %v1114 = vrot.slane %v940, 1
      %v1115 = vsel %vm1088, %v1112, %v1114
      %v1116 = vrot.slane %v941, 1
      %v1117 = vsel %vm1088, %v1114, %v1116
      %v1118 = vrot.slane %v942, 1
      %v1119 = vsel %vm1088, %v1116, %v1118
      %v1120 = vrot.slane %v943, 1
      %v1121 = vsel %vm1088, %v1118, %v1120
      %v1122 = vrot.slane %v944, 1
      %v1123 = vsel %vm1088, %v1120, %v1122
      %v1124 = vrot.slane %v945, 1
      %v1125 = vsel %vm1088, %v1122, %v1124
      %v1126 = vrot.slane %v946, 1
      %v1127 = vsel %vm1088, %v1124, %v1126
      %v1128 = vrot.slane %v947, 1
      %v1129 = vsel %vm1088, %v1126, %v1128
      %v1130 = vrot.slane %v948, 1
      %v1131 = vsel %vm1088, %v1128, %v1130
      %v1132 = vrot.slane %v949, 1
      %v1133 = vsel %vm1088, %v1130, %v1132
      %v1134 = vrot.slane %v950, 1
      %v1135 = vsel %vm1088, %v1132, %v1134
      %v1136 = vrot.slane %v951, 1
      %v1137 = vsel %vm1088, %v1134, %v1136
      %v1138 = vrot.slane %v952, 1
      %v1139 = vsel %vm1088, %v1136, %v1138
      %v1140 = vrot.slane %v953, 1
      %v1141 = vsel %vm1088, %v1138, %v1140
      %v1142 = vrot.slane %v954, 1
      %v1143 = vsel %vm1088, %v1140, %v1142
      %v1144 = vrot.slane %v955, 1
      %v1145 = vsel %vm1088, %v1142, %v1144
      %v1146 = vrot.slane %v956, 1
      %v1147 = vsel %vm1088, %v1144, %v1146
      %v1148 = vrot.slane %v957, 1
      %v1149 = vsel %vm1088, %v1146, %v1148
      %v1150 = vrot.slane %v958, 1
      %v1151 = vsel %vm1088, %v1148, %v1150
      %v1184 = vsel %vm1088, %v1150, 0.0
      %v1185 = vld [vmem:[%s8] sm:$0xff]
      %v1186 = vld [vmem:[%s8 + $0x8] sm:$0xff]
      %v1187 = vld [vmem:[%s8 + $0x10] sm:$0xff]
      %v1188 = vld [vmem:[%s8 + $0x18] sm:$0xff]
      %v1189 = vld [vmem:[%s8 + $0x20] sm:$0xff]
      %v1190 = vld [vmem:[%s8 + $0x28] sm:$0xff]
      %v1191 = vld [vmem:[%s8 + $0x30] sm:$0xff]
      %v1192 = vld [vmem:[%s8 + $0x38] sm:$0xff]
      %v1193 = vld [vmem:[%s8 + $0x40] sm:$0xff]
      %v1194 = vld [vmem:[%s8 + $0x48] sm:$0xff]
      %v1195 = vld [vmem:[%s8 + $0x50] sm:$0xff]
      %v1196 = vld [vmem:[%s8 + $0x58] sm:$0xff]
      %v1197 = vld [vmem:[%s8 + $0x60] sm:$0xff]
      %v1198 = vld [vmem:[%s8 + $0x68] sm:$0xff]
      %v1199 = vld [vmem:[%s8 + $0x70] sm:$0xff]
      %v1200 = vld [vmem:[%s8 + $0x78] sm:$0xff]
      %v1201 = vld [vmem:[%s8 + $0x80] sm:$0xff]
      %v1202 = vld [vmem:[%s8 + $0x88] sm:$0xff]
      %v1203 = vld [vmem:[%s8 + $0x90] sm:$0xff]
      %v1204 = vld [vmem:[%s8 + $0x98] sm:$0xff]
      %v1205 = vld [vmem:[%s8 + $0xa0] sm:$0xff]
      %v1206 = vld [vmem:[%s8 + $0xa8] sm:$0xff]
      %v1207 = vld [vmem:[%s8 + $0xb0] sm:$0xff]
      %v1208 = vld [vmem:[%s8 + $0xb8] sm:$0xff]
      %v1209 = vld [vmem:[%s8 + $0xc0] sm:$0xff]
      %v1210 = vld [vmem:[%s8 + $0xc8] sm:$0xff]
      %v1211 = vld [vmem:[%s8 + $0xd0] sm:$0xff]
      %v1212 = vld [vmem:[%s8 + $0xd8] sm:$0xff]
      %v1213 = vld [vmem:[%s8 + $0xe0] sm:$0xff]
      %v1214 = vld [vmem:[%s8 + $0xe8] sm:$0xff]
      %v1215 = vld [vmem:[%s8 + $0xf0] sm:$0xff]
      %v1216 = vld [vmem:[%s8 + $0xf8] sm:$0xff]
      %1218 = vset.pattern.permute.xlu0 0
      %1219 = vperm.xlu0 %1218, %v1185
      %v1220 = vpop.permute.xlu0 %1219
      %1223 = vset.pattern.permute.xlu0 0
      %1224 = vperm.xlu0 %1223, %v1186
      %v1225 = vpop.permute.xlu0 %1224
      %1228 = vset.pattern.permute.xlu0 0
      %1229 = vperm.xlu0 %1228, %v1187
      %v1230 = vpop.permute.xlu0 %1229
      %1233 = vset.pattern.permute.xlu0 0
      %1234 = vperm.xlu0 %1233, %v1188
      %v1235 = vpop.permute.xlu0 %1234
      %1238 = vset.pattern.permute.xlu0 0
      %1239 = vperm.xlu0 %1238, %v1189
      %v1240 = vpop.permute.xlu0 %1239
      %1243 = vset.pattern.permute.xlu0 0
      %1244 = vperm.xlu0 %1243, %v1190
      %v1245 = vpop.permute.xlu0 %1244
      %1248 = vset.pattern.permute.xlu0 0
      %1249 = vperm.xlu0 %1248, %v1191
      %v1250 = vpop.permute.xlu0 %1249
      %1253 = vset.pattern.permute.xlu0 0
      %1254 = vperm.xlu0 %1253, %v1192
      %v1255 = vpop.permute.xlu0 %1254
      %1258 = vset.pattern.permute.xlu0 0
      %1259 = vperm.xlu0 %1258, %v1193
      %v1260 = vpop.permute.xlu0 %1259
      %1263 = vset.pattern.permute.xlu0 0
      %1264 = vperm.xlu0 %1263, %v1194
      %v1265 = vpop.permute.xlu0 %1264
      %1268 = vset.pattern.permute.xlu0 0
      %1269 = vperm.xlu0 %1268, %v1195
      %v1270 = vpop.permute.xlu0 %1269
      %1273 = vset.pattern.permute.xlu0 0
      %1274 = vperm.xlu0 %1273, %v1196
      %v1275 = vpop.permute.xlu0 %1274
      %1278 = vset.pattern.permute.xlu0 0
      %1279 = vperm.xlu0 %1278, %v1197
      %v1280 = vpop.permute.xlu0 %1279
      %1283 = vset.pattern.permute.xlu0 0
      %1284 = vperm.xlu0 %1283, %v1198
      %v1285 = vpop.permute.xlu0 %1284
      %1288 = vset.pattern.permute.xlu0 0
      %1289 = vperm.xlu0 %1288, %v1199
      %v1290 = vpop.permute.xlu0 %1289
      %1293 = vset.pattern.permute.xlu0 0
      %1294 = vperm.xlu0 %1293, %v1200
      %v1295 = vpop.permute.xlu0 %1294
      %1298 = vset.pattern.permute.xlu0 0
      %1299 = vperm.xlu0 %1298, %v1201
      %v1300 = vpop.permute.xlu0 %1299
      %1303 = vset.pattern.permute.xlu0 0
      %1304 = vperm.xlu0 %1303, %v1202
      %v1305 = vpop.permute.xlu0 %1304
      %1308 = vset.pattern.permute.xlu0 0
      %1309 = vperm.xlu0 %1308, %v1203
      %v1310 = vpop.permute.xlu0 %1309
      %1313 = vset.pattern.permute.xlu0 0
      %1314 = vperm.xlu0 %1313, %v1204
      %v1315 = vpop.permute.xlu0 %1314
      %1318 = vset.pattern.permute.xlu0 0
      %1319 = vperm.xlu0 %1318, %v1205
      %v1320 = vpop.permute.xlu0 %1319
      %1323 = vset.pattern.permute.xlu0 0
      %1324 = vperm.xlu0 %1323, %v1206
      %v1325 = vpop.permute.xlu0 %1324
      %1328 = vset.pattern.permute.xlu0 0
      %1329 = vperm.xlu0 %1328, %v1207
      %v1330 = vpop.permute.xlu0 %1329
      %1333 = vset.pattern.permute.xlu0 0
      %1334 = vperm.xlu0 %1333, %v1208
      %v1335 = vpop.permute.xlu0 %1334
      %1338 = vset.pattern.permute.xlu0 0
      %1339 = vperm.xlu0 %1338, %v1209
      %v1340 = vpop.permute.xlu0 %1339
      %1343 = vset.pattern.permute.xlu0 0
      %1344 = vperm.xlu0 %1343, %v1210
      %v1345 = vpop.permute.xlu0 %1344
      %1348 = vset.pattern.permute.xlu0 0
      %1349 = vperm.xlu0 %1348, %v1211
      %v1350 = vpop.permute.xlu0 %1349
      %1353 = vset.pattern.permute.xlu0 0
      %1354 = vperm.xlu0 %1353, %v1212
      %v1355 = vpop.permute.xlu0 %1354
      %1358 = vset.pattern.permute.xlu0 0
      %1359 = vperm.xlu0 %1358, %v1213
      %v1360 = vpop.permute.xlu0 %1359
      %1363 = vset.pattern.permute.xlu0 0
      %1364 = vperm.xlu0 %1363, %v1214
      %v1365 = vpop.permute.xlu0 %1364
      %1368 = vset.pattern.permute.xlu0 0
      %1369 = vperm.xlu0 %1368, %v1215
      %v1370 = vpop.permute.xlu0 %1369
      %1373 = vset.pattern.permute.xlu0 0
      %1374 = vperm.xlu0 %1373, %v1216
      %v1375 = vpop.permute.xlu0 %1374
      %v1377 = vmul.f32 %v1220, %v1087
      %v1378 = vmul.f32 %v1225, %v994
      %v1379 = vmul.f32 %v1230, %v996
      %v1380 = vmul.f32 %v1235, %v998
      %v1381 = vmul.f32 %v1240, %v1000
      %v1382 = vmul.f32 %v1245, %v1002
      %v1383 = vmul.f32 %v1250, %v1004
      %v1384 = vmul.f32 %v1255, %v1006
      %v1385 = vmul.f32 %v1260, %v1008
      %v1386 = vmul.f32 %v1265, %v1010
      %v1387 = vmul.f32 %v1270, %v1012
      %v1388 = vmul.f32 %v1275, %v1014
      %v1389 = vmul.f32 %v1280, %v1016
      %v1390 = vmul.f32 %v1285, %v1018
      %v1391 = vmul.f32 %v1290, %v1020
      %v1392 = vmul.f32 %v1295, %v1022
      %v1393 = vmul.f32 %v1300, %v1024
      %v1394 = vmul.f32 %v1305, %v1026
      %v1395 = vmul.f32 %v1310, %v1028
      %v1396 = vmul.f32 %v1315, %v1030
      %v1397 = vmul.f32 %v1320, %v1032
      %v1398 = vmul.f32 %v1325, %v1034
      %v1399 = vmul.f32 %v1330, %v1036
      %v1400 = vmul.f32 %v1335, %v1038
      %v1401 = vmul.f32 %v1340, %v1040
      %v1402 = vmul.f32 %v1345, %v1042
      %v1403 = vmul.f32 %v1350, %v1044
      %v1404 = vmul.f32 %v1355, %v1046
      %v1405 = vmul.f32 %v1360, %v1048
      %v1406 = vmul.f32 %v1365, %v1050
      %v1407 = vmul.f32 %v1370, %v1052
      %v1408 = vmul.f32 %v1375, %v1054
      %1409 = vst [vmem:[#allocation2 + $0x30] sm:$0xff] %v1377
      %1410 = vst [vmem:[#allocation2 + $0x48] sm:$0xff] %v1378
      %1411 = vst [vmem:[#allocation2 + $0x60] sm:$0xff] %v1379
      %1412 = vst [vmem:[#allocation2 + $0x78] sm:$0xff] %v1380
      %1413 = vst [vmem:[#allocation2 + $0x90] sm:$0xff] %v1381
      %1414 = vst [vmem:[#allocation2 + $0xa8] sm:$0xff] %v1382
      %1415 = vst [vmem:[#allocation2 + $0xc0] sm:$0xff] %v1383
      %1416 = vst [vmem:[#allocation2 + $0xd8] sm:$0xff] %v1384
      %1417 = vst [vmem:[#allocation2 + $0xf0] sm:$0xff] %v1385
      %1418 = vst [vmem:[#allocation2 + $0x108] sm:$0xff] %v1386
      %1419 = vst [vmem:[#allocation2 + $0x120] sm:$0xff] %v1387
      %1420 = vst [vmem:[#allocation2 + $0x138] sm:$0xff] %v1388
      %1421 = vst [vmem:[#allocation2 + $0x150] sm:$0xff] %v1389
      %1422 = vst [vmem:[#allocation2 + $0x168] sm:$0xff] %v1390
      %1423 = vst [vmem:[#allocation2 + $0x180] sm:$0xff] %v1391
      %1424 = vst [vmem:[#allocation2 + $0x198] sm:$0xff] %v1392
      %1425 = vst [vmem:[#allocation2 + $0x1b0] sm:$0xff] %v1393
      %1426 = vst [vmem:[#allocation2 + $0x1c8] sm:$0xff] %v1394
      %1427 = vst [vmem:[#allocation2 + $0x1e0] sm:$0xff] %v1395
      %1428 = vst [vmem:[#allocation2 + $0x1f8] sm:$0xff] %v1396
      %1429 = vst [vmem:[#allocation2 + $0x210] sm:$0xff] %v1397
      %1430 = vst [vmem:[#allocation2 + $0x228] sm:$0xff] %v1398
      %1431 = vst [vmem:[#allocation2 + $0x240] sm:$0xff] %v1399
      %1432 = vst [vmem:[#allocation2 + $0x258] sm:$0xff] %v1400
      %1433 = vst [vmem:[#allocation2 + $0x270] sm:$0xff] %v1401
      %1434 = vst [vmem:[#allocation2 + $0x288] sm:$0xff] %v1402
      %1435 = vst [vmem:[#allocation2 + $0x2a0] sm:$0xff] %v1403
      %1436 = vst [vmem:[#allocation2 + $0x2b8] sm:$0xff] %v1404
      %1437 = vst [vmem:[#allocation2 + $0x2d0] sm:$0xff] %v1405
      %1438 = vst [vmem:[#allocation2 + $0x2e8] sm:$0xff] %v1406
      %1439 = vst [vmem:[#allocation2 + $0x300] sm:$0xff] %v1407
      %1440 = vst [vmem:[#allocation2 + $0x318] sm:$0xff] %v1408
      %1441 = vst [vmem:[#allocation2 + $0x38] sm:$0xff] %v927
      %1442 = vst [vmem:[#allocation2 + $0x50] sm:$0xff] %v928
      %1443 = vst [vmem:[#allocation2 + $0x68] sm:$0xff] %v929
      %1444 = vst [vmem:[#allocation2 + $0x80] sm:$0xff] %v930
      %1445 = vst [vmem:[#allocation2 + $0x98] sm:$0xff] %v931
      %1446 = vst [vmem:[#allocation2 + $0xb0] sm:$0xff] %v932
      %1447 = vst [vmem:[#allocation2 + $0xc8] sm:$0xff] %v933
      %1448 = vst [vmem:[#allocation2 + $0xe0] sm:$0xff] %v934
      %1449 = vst [vmem:[#allocation2 + $0xf8] sm:$0xff] %v935
      %1450 = vst [vmem:[#allocation2 + $0x110] sm:$0xff] %v936
      %1451 = vst [vmem:[#allocation2 + $0x128] sm:$0xff] %v937
      %1452 = vst [vmem:[#allocation2 + $0x140] sm:$0xff] %v938
      %1453 = vst [vmem:[#allocation2 + $0x158] sm:$0xff] %v939
      %1454 = vst [vmem:[#allocation2 + $0x170] sm:$0xff] %v940
      %1455 = vst [vmem:[#allocation2 + $0x188] sm:$0xff] %v941
      %1456 = vst [vmem:[#allocation2 + $0x1a0] sm:$0xff] %v942
      %1457 = vst [vmem:[#allocation2 + $0x1b8] sm:$0xff] %v943
      %1458 = vst [vmem:[#allocation2 + $0x1d0] sm:$0xff] %v944
      %1459 = vst [vmem:[#allocation2 + $0x1e8] sm:$0xff] %v945
      %1460 = vst [vmem:[#allocation2 + $0x200] sm:$0xff] %v946
      %1461 = vst [vmem:[#allocation2 + $0x218] sm:$0xff] %v947
      %1462 = vst [vmem:[#allocation2 + $0x230] sm:$0xff] %v948
      %1463 = vst [vmem:[#allocation2 + $0x248] sm:$0xff] %v949
      %1464 = vst [vmem:[#allocation2 + $0x260] sm:$0xff] %v950
      %1465 = vst [vmem:[#allocation2 + $0x278] sm:$0xff] %v951
      %1466 = vst [vmem:[#allocation2 + $0x290] sm:$0xff] %v952
      %1467 = vst [vmem:[#allocation2 + $0x2a8] sm:$0xff] %v953
      %1468 = vst [vmem:[#allocation2 + $0x2c0] sm:$0xff] %v954
      %1469 = vst [vmem:[#allocation2 + $0x2d8] sm:$0xff] %v955
      %1470 = vst [vmem:[#allocation2 + $0x2f0] sm:$0xff] %v956
      %1471 = vst [vmem:[#allocation2 + $0x308] sm:$0xff] %v957
      %1472 = vst [vmem:[#allocation2 + $0x320] sm:$0xff] %v958
      %v1473 = vld [vmem:[%s9] sm:$0xff]
      %v1474 = vld [vmem:[%s9 + $0x8] sm:$0xff]
      %v1475 = vld [vmem:[%s9 + $0x10] sm:$0xff]
      %v1476 = vld [vmem:[%s9 + $0x18] sm:$0xff]
      %v1477 = vld [vmem:[%s9 + $0x20] sm:$0xff]
      %v1478 = vld [vmem:[%s9 + $0x28] sm:$0xff]
      %v1479 = vld [vmem:[%s9 + $0x30] sm:$0xff]
      %v1480 = vld [vmem:[%s9 + $0x38] sm:$0xff]
      %v1481 = vld [vmem:[%s9 + $0x40] sm:$0xff]
      %v1482 = vld [vmem:[%s9 + $0x48] sm:$0xff]
      %v1483 = vld [vmem:[%s9 + $0x50] sm:$0xff]
      %v1484 = vld [vmem:[%s9 + $0x58] sm:$0xff]
      %v1485 = vld [vmem:[%s9 + $0x60] sm:$0xff]
      %v1486 = vld [vmem:[%s9 + $0x68] sm:$0xff]
      %v1487 = vld [vmem:[%s9 + $0x70] sm:$0xff]
      %v1488 = vld [vmem:[%s9 + $0x78] sm:$0xff]
      %v1489 = vld [vmem:[%s9 + $0x80] sm:$0xff]
      %v1490 = vld [vmem:[%s9 + $0x88] sm:$0xff]
      %v1491 = vld [vmem:[%s9 + $0x90] sm:$0xff]
      %v1492 = vld [vmem:[%s9 + $0x98] sm:$0xff]
      %v1493 = vld [vmem:[%s9 + $0xa0] sm:$0xff]
      %v1494 = vld [vmem:[%s9 + $0xa8] sm:$0xff]
      %v1495 = vld [vmem:[%s9 + $0xb0] sm:$0xff]
      %v1496 = vld [vmem:[%s9 + $0xb8] sm:$0xff]
      %v1497 = vld [vmem:[%s9 + $0xc0] sm:$0xff]
      %v1498 = vld [vmem:[%s9 + $0xc8] sm:$0xff]
      %v1499 = vld [vmem:[%s9 + $0xd0] sm:$0xff]
      %v1500 = vld [vmem:[%s9 + $0xd8] sm:$0xff]
      %v1501 = vld [vmem:[%s9 + $0xe0] sm:$0xff]
      %v1502 = vld [vmem:[%s9 + $0xe8] sm:$0xff]
      %v1503 = vld [vmem:[%s9 + $0xf0] sm:$0xff]
      %v1504 = vld [vmem:[%s9 + $0xf8] sm:$0xff]
      %1506 = vset.pattern.permute.xlu0 0
      %1507 = vperm.xlu0 %1506, %v1473
      %v1508 = vpop.permute.xlu0 %1507
      %1511 = vset.pattern.permute.xlu0 0
      %1512 = vperm.xlu0 %1511, %v1474
      %v1513 = vpop.permute.xlu0 %1512
      %1516 = vset.pattern.permute.xlu0 0
      %1517 = vperm.xlu0 %1516, %v1475
      %v1518 = vpop.permute.xlu0 %1517
      %1521 = vset.pattern.permute.xlu0 0
      %1522 = vperm.xlu0 %1521, %v1476
      %v1523 = vpop.permute.xlu0 %1522
      %1526 = vset.pattern.permute.xlu0 0
      %1527 = vperm.xlu0 %1526, %v1477
      %v1528 = vpop.permute.xlu0 %1527
      %1531 = vset.pattern.permute.xlu0 0
      %1532 = vperm.xlu0 %1531, %v1478
      %v1533 = vpop.permute.xlu0 %1532
      %1536 = vset.pattern.permute.xlu0 0
      %1537 = vperm.xlu0 %1536, %v1479
      %v1538 = vpop.permute.xlu0 %1537
      %1541 = vset.pattern.permute.xlu0 0
      %1542 = vperm.xlu0 %1541, %v1480
      %v1543 = vpop.permute.xlu0 %1542
      %1546 = vset.pattern.permute.xlu0 0
      %1547 = vperm.xlu0 %1546, %v1481
      %v1548 = vpop.permute.xlu0 %1547
      %1551 = vset.pattern.permute.xlu0 0
      %1552 = vperm.xlu0 %1551, %v1482
      %v1553 = vpop.permute.xlu0 %1552
      %1556 = vset.pattern.permute.xlu0 0
      %1557 = vperm.xlu0 %1556, %v1483
      %v1558 = vpop.permute.xlu0 %1557
      %1561 = vset.pattern.permute.xlu0 0
      %1562 = vperm.xlu0 %1561, %v1484
      %v1563 = vpop.permute.xlu0 %1562
      %1566 = vset.pattern.permute.xlu0 0
      %1567 = vperm.xlu0 %1566, %v1485
      %v1568 = vpop.permute.xlu0 %1567
      %1571 = vset.pattern.permute.xlu0 0
      %1572 = vperm.xlu0 %1571, %v1486
      %v1573 = vpop.permute.xlu0 %1572
      %1576 = vset.pattern.permute.xlu0 0
      %1577 = vperm.xlu0 %1576, %v1487
      %v1578 = vpop.permute.xlu0 %1577
      %1581 = vset.pattern.permute.xlu0 0
      %1582 = vperm.xlu0 %1581, %v1488
      %v1583 = vpop.permute.xlu0 %1582
      %1586 = vset.pattern.permute.xlu0 0
      %1587 = vperm.xlu0 %1586, %v1489
      %v1588 = vpop.permute.xlu0 %1587
      %1591 = vset.pattern.permute.xlu0 0
      %1592 = vperm.xlu0 %1591, %v1490
      %v1593 = vpop.permute.xlu0 %1592
      %1596 = vset.pattern.permute.xlu0 0
      %1597 = vperm.xlu0 %1596, %v1491
      %v1598 = vpop.permute.xlu0 %1597
      %1601 = vset.pattern.permute.xlu0 0
      %1602 = vperm.xlu0 %1601, %v1492
      %v1603 = vpop.permute.xlu0 %1602
      %1606 = vset.pattern.permute.xlu0 0
      %1607 = vperm.xlu0 %1606, %v1493
      %v1608 = vpop.permute.xlu0 %1607
      %1611 = vset.pattern.permute.xlu0 0
      %1612 = vperm.xlu0 %1611, %v1494
      %v1613 = vpop.permute.xlu0 %1612
      %1616 = vset.pattern.permute.xlu0 0
      %1617 = vperm.xlu0 %1616, %v1495
      %v1618 = vpop.permute.xlu0 %1617
      %1621 = vset.pattern.permute.xlu0 0
      %1622 = vperm.xlu0 %1621, %v1496
      %v1623 = vpop.permute.xlu0 %1622
      %1626 = vset.pattern.permute.xlu0 0
      %1627 = vperm.xlu0 %1626, %v1497
      %v1628 = vpop.permute.xlu0 %1627
      %1631 = vset.pattern.permute.xlu0 0
      %1632 = vperm.xlu0 %1631, %v1498
      %v1633 = vpop.permute.xlu0 %1632
      %1636 = vset.pattern.permute.xlu0 0
      %1637 = vperm.xlu0 %1636, %v1499
      %v1638 = vpop.permute.xlu0 %1637
      %1641 = vset.pattern.permute.xlu0 0
      %1642 = vperm.xlu0 %1641, %v1500
      %v1643 = vpop.permute.xlu0 %1642
      %1646 = vset.pattern.permute.xlu0 0
      %1647 = vperm.xlu0 %1646, %v1501
      %v1648 = vpop.permute.xlu0 %1647
      %1651 = vset.pattern.permute.xlu0 0
      %1652 = vperm.xlu0 %1651, %v1502
      %v1653 = vpop.permute.xlu0 %1652
      %1656 = vset.pattern.permute.xlu0 0
      %1657 = vperm.xlu0 %1656, %v1503
      %v1658 = vpop.permute.xlu0 %1657
      %1661 = vset.pattern.permute.xlu0 0
      %1662 = vperm.xlu0 %1661, %v1504
      %v1663 = vpop.permute.xlu0 %1662
      %v1665 = vmul.f32 %v1508, %v1091
      %v1666 = vmul.f32 %v1513, %v1093
      %v1667 = vmul.f32 %v1518, %v1095
      %v1668 = vmul.f32 %v1523, %v1097
      %v1669 = vmul.f32 %v1528, %v1099
      %v1670 = vmul.f32 %v1533, %v1101
      %v1671 = vmul.f32 %v1538, %v1103
      %v1672 = vmul.f32 %v1543, %v1105
      %v1673 = vmul.f32 %v1548, %v1107
      %v1674 = vmul.f32 %v1553, %v1109
      %v1675 = vmul.f32 %v1558, %v1111
      %v1676 = vmul.f32 %v1563, %v1113
      %v1677 = vmul.f32 %v1568, %v1115
      %v1678 = vmul.f32 %v1573, %v1117
      %v1679 = vmul.f32 %v1578, %v1119
      %v1680 = vmul.f32 %v1583, %v1121
      %v1681 = vmul.f32 %v1588, %v1123
      %v1682 = vmul.f32 %v1593, %v1125
      %v1683 = vmul.f32 %v1598, %v1127
      %v1684 = vmul.f32 %v1603, %v1129
      %v1685 = vmul.f32 %v1608, %v1131
      %v1686 = vmul.f32 %v1613, %v1133
      %v1687 = vmul.f32 %v1618, %v1135
      %v1688 = vmul.f32 %v1623, %v1137
      %v1689 = vmul.f32 %v1628, %v1139
      %v1690 = vmul.f32 %v1633, %v1141
      %v1691 = vmul.f32 %v1638, %v1143
      %v1692 = vmul.f32 %v1643, %v1145
      %v1693 = vmul.f32 %v1648, %v1147
      %v1694 = vmul.f32 %v1653, %v1149
      %v1695 = vmul.f32 %v1658, %v1151
      %v1696 = vmul.f32 %v1663, %v1184
      %1697 = vst [vmem:[#allocation2 + $0x40] sm:$0xff] %v1665
      %1698 = vst [vmem:[#allocation2 + $0x58] sm:$0xff] %v1666
      %1699 = vst [vmem:[#allocation2 + $0x70] sm:$0xff] %v1667
      %1700 = vst [vmem:[#allocation2 + $0x88] sm:$0xff] %v1668
      %1701 = vst [vmem:[#allocation2 + $0xa0] sm:$0xff] %v1669
      %1702 = vst [vmem:[#allocation2 + $0xb8] sm:$0xff] %v1670
      %1703 = vst [vmem:[#allocation2 + $0xd0] sm:$0xff] %v1671
      %1704 = vst [vmem:[#allocation2 + $0xe8] sm:$0xff] %v1672
      %1705 = vst [vmem:[#allocation2 + $0x100] sm:$0xff] %v1673
      %1706 = vst [vmem:[#allocation2 + $0x118] sm:$0xff] %v1674
      %1707 = vst [vmem:[#allocation2 + $0x130] sm:$0xff] %v1675
      %1708 = vst [vmem:[#allocation2 + $0x148] sm:$0xff] %v1676
      %1709 = vst [vmem:[#allocation2 + $0x160] sm:$0xff] %v1677
      %1710 = vst [vmem:[#allocation2 + $0x178] sm:$0xff] %v1678
      %1711 = vst [vmem:[#allocation2 + $0x190] sm:$0xff] %v1679
      %1712 = vst [vmem:[#allocation2 + $0x1a8] sm:$0xff] %v1680
      %1713 = vst [vmem:[#allocation2 + $0x1c0] sm:$0xff] %v1681
      %1714 = vst [vmem:[#allocation2 + $0x1d8] sm:$0xff] %v1682
      %1715 = vst [vmem:[#allocation2 + $0x1f0] sm:$0xff] %v1683
      %1716 = vst [vmem:[#allocation2 + $0x208] sm:$0xff] %v1684
      %1717 = vst [vmem:[#allocation2 + $0x220] sm:$0xff] %v1685
      %1718 = vst [vmem:[#allocation2 + $0x238] sm:$0xff] %v1686
      %1719 = vst [vmem:[#allocation2 + $0x250] sm:$0xff] %v1687
      %1720 = vst [vmem:[#allocation2 + $0x268] sm:$0xff] %v1688
      %1721 = vst [vmem:[#allocation2 + $0x280] sm:$0xff] %v1689
      %1722 = vst [vmem:[#allocation2 + $0x298] sm:$0xff] %v1690
      %1723 = vst [vmem:[#allocation2 + $0x2b0] sm:$0xff] %v1691
      %1724 = vst [vmem:[#allocation2 + $0x2c8] sm:$0xff] %v1692
      %1725 = vst [vmem:[#allocation2 + $0x2e0] sm:$0xff] %v1693
      %1726 = vst [vmem:[#allocation2 + $0x2f8] sm:$0xff] %v1694
      %1727 = vst [vmem:[#allocation2 + $0x310] sm:$0xff] %v1695
      %1728 = vst [vmem:[#allocation2 + $0x328] sm:$0xff] %v1696
      %1729 = vst [vmem:[#allocation2] sm:$0xff] 0.0
      %1730 = vst [vmem:[#allocation2 + $0x8] sm:$0xff] 0.0
      %1731 = vst [vmem:[#allocation2 + $0x10] sm:$0xff] 0.0
      %1732 = vst [vmem:[#allocation2 + $0x18] sm:$0xff] 0.0
      %1733 = vst [vmem:[#allocation2 + $0x20] sm:$0xff] 0.0
      %1734 = vst [vmem:[#allocation2 + $0x28] sm:$0xff] 0.0
      %1735 = vst [vmem:[#allocation2 + $0x330] sm:$0xff] 0.0
      %1736 = vst [vmem:[#allocation2 + $0x338] sm:$0xff] 0.0
      %1737 = vst [vmem:[#allocation2 + $0x340] sm:$0xff] 0.0
      %1738 = vst [vmem:[#allocation2 + $0x348] sm:$0xff] 0.0
      %1739 = vst [vmem:[#allocation2 + $0x350] sm:$0xff] 0.0
      %1740 = vst [vmem:[#allocation2 + $0x358] sm:$0xff] 0.0
      %v1741 = vld [vmem:[#allocation2] sm:$0xff]
      %v1742 = vld [vmem:[#allocation2 + $0x8] sm:$0xff]
      %v1743 = vld [vmem:[#allocation2 + $0x10] sm:$0xff]
      %v1744 = vld [vmem:[#allocation2 + $0x18] sm:$0xff]
      %v1745 = vld [vmem:[#allocation2 + $0x20] sm:$0xff]
      %v1746 = vld [vmem:[#allocation2 + $0x28] sm:$0xff]
      %v1747 = vld [vmem:[#allocation2 + $0x30] sm:$0xff]
      %v1748 = vld [vmem:[#allocation2 + $0x38] sm:$0xff]
      %v1749 = vld [vmem:[#allocation2 + $0x40] sm:$0xff]
      %v1750 = vld [vmem:[#allocation2 + $0x48] sm:$0xff]
      %v1751 = vld [vmem:[#allocation2 + $0x50] sm:$0xff]
      %v1752 = vld [vmem:[#allocation2 + $0x58] sm:$0xff]
      %v1753 = vld [vmem:[#allocation2 + $0x60] sm:$0xff]
      %v1754 = vld [vmem:[#allocation2 + $0x68] sm:$0xff]
      %v1755 = vld [vmem:[#allocation2 + $0x70] sm:$0xff]
      %v1756 = vld [vmem:[#allocation2 + $0x78] sm:$0xff]
      %v1757 = vld [vmem:[#allocation2 + $0x80] sm:$0xff]
      %v1758 = vld [vmem:[#allocation2 + $0x88] sm:$0xff]
      %v1759 = vld [vmem:[#allocation2 + $0x90] sm:$0xff]
      %v1760 = vld [vmem:[#allocation2 + $0x98] sm:$0xff]
      %v1761 = vld [vmem:[#allocation2 + $0xa0] sm:$0xff]
      %v1762 = vld [vmem:[#allocation2 + $0xa8] sm:$0xff]
      %v1763 = vld [vmem:[#allocation2 + $0xb0] sm:$0xff]
      %v1764 = vld [vmem:[#allocation2 + $0xb8] sm:$0xff]
      %v1765 = vld [vmem:[#allocation2 + $0xc0] sm:$0xff]
      %v1766 = vld [vmem:[#allocation2 + $0xc8] sm:$0xff]
      %v1767 = vld [vmem:[#allocation2 + $0xd0] sm:$0xff]
      %v1768 = vld [vmem:[#allocation2 + $0xd8] sm:$0xff]
      %v1769 = vld [vmem:[#allocation2 + $0xe0] sm:$0xff]
      %v1770 = vld [vmem:[#allocation2 + $0xe8] sm:$0xff]
      %v1771 = vld [vmem:[#allocation2 + $0xf0] sm:$0xff]
      %v1772 = vld [vmem:[#allocation2 + $0xf8] sm:$0xff]
      %v1773 = vld [vmem:[#allocation2 + $0x100] sm:$0xff]
      %v1774 = vld [vmem:[#allocation2 + $0x108] sm:$0xff]
      %v1775 = vld [vmem:[#allocation2 + $0x110] sm:$0xff]
      %v1776 = vld [vmem:[#allocation2 + $0x118] sm:$0xff]
      %v1777 = vld [vmem:[#allocation2 + $0x120] sm:$0xff]
      %v1778 = vld [vmem:[#allocation2 + $0x128] sm:$0xff]
      %v1779 = vld [vmem:[#allocation2 + $0x130] sm:$0xff]
      %v1780 = vld [vmem:[#allocation2 + $0x138] sm:$0xff]
      %v1781 = vld [vmem:[#allocation2 + $0x140] sm:$0xff]
      %v1782 = vld [vmem:[#allocation2 + $0x148] sm:$0xff]
      %v1783 = vld [vmem:[#allocation2 + $0x150] sm:$0xff]
      %v1784 = vld [vmem:[#allocation2 + $0x158] sm:$0xff]
      %v1785 = vld [vmem:[#allocation2 + $0x160] sm:$0xff]
      %v1786 = vld [vmem:[#allocation2 + $0x168] sm:$0xff]
      %v1787 = vld [vmem:[#allocation2 + $0x170] sm:$0xff]
      %v1788 = vld [vmem:[#allocation2 + $0x178] sm:$0xff]
      %v1789 = vld [vmem:[#allocation2 + $0x180] sm:$0xff]
      %v1790 = vld [vmem:[#allocation2 + $0x188] sm:$0xff]
      %v1791 = vld [vmem:[#allocation2 + $0x190] sm:$0xff]
      %v1792 = vld [vmem:[#allocation2 + $0x198] sm:$0xff]
      %v1793 = vld [vmem:[#allocation2 + $0x1a0] sm:$0xff]
      %v1794 = vld [vmem:[#allocation2 + $0x1a8] sm:$0xff]
      %v1795 = vld [vmem:[#allocation2 + $0x1b0] sm:$0xff]
      %v1796 = vld [vmem:[#allocation2 + $0x1b8] sm:$0xff]
      %v1797 = vld [vmem:[#allocation2 + $0x1c0] sm:$0xff]
      %v1798 = vld [vmem:[#allocation2 + $0x1c8] sm:$0xff]
      %v1799 = vld [vmem:[#allocation2 + $0x1d0] sm:$0xff]
      %v1800 = vld [vmem:[#allocation2 + $0x1d8] sm:$0xff]
      %v1801 = vld [vmem:[#allocation2 + $0x1e0] sm:$0xff]
      %v1802 = vld [vmem:[#allocation2 + $0x1e8] sm:$0xff]
      %v1803 = vld [vmem:[#allocation2 + $0x1f0] sm:$0xff]
      %v1804 = vld [vmem:[#allocation2 + $0x1f8] sm:$0xff]
      %v1805 = vld [vmem:[#allocation2 + $0x200] sm:$0xff]
      %v1806 = vld [vmem:[#allocation2 + $0x208] sm:$0xff]
      %v1807 = vld [vmem:[#allocation2 + $0x210] sm:$0xff]
      %v1808 = vld [vmem:[#allocation2 + $0x218] sm:$0xff]
      %v1809 = vld [vmem:[#allocation2 + $0x220] sm:$0xff]
      %v1810 = vld [vmem:[#allocation2 + $0x228] sm:$0xff]
      %v1811 = vld [vmem:[#allocation2 + $0x230] sm:$0xff]
      %v1812 = vld [vmem:[#allocation2 + $0x238] sm:$0xff]
      %v1813 = vld [vmem:[#allocation2 + $0x240] sm:$0xff]
      %v1814 = vld [vmem:[#allocation2 + $0x248] sm:$0xff]
      %v1815 = vld [vmem:[#allocation2 + $0x250] sm:$0xff]
      %v1816 = vld [vmem:[#allocation2 + $0x258] sm:$0xff]
      %v1817 = vld [vmem:[#allocation2 + $0x260] sm:$0xff]
      %v1818 = vld [vmem:[#allocation2 + $0x268] sm:$0xff]
      %v1819 = vld [vmem:[#allocation2 + $0x270] sm:$0xff]
      %v1820 = vld [vmem:[#allocation2 + $0x278] sm:$0xff]
      %v1821 = vld [vmem:[#allocation2 + $0x280] sm:$0xff]
      %v1822 = vld [vmem:[#allocation2 + $0x288] sm:$0xff]
      %v1823 = vld [vmem:[#allocation2 + $0x290] sm:$0xff]
      %v1824 = vld [vmem:[#allocation2 + $0x298] sm:$0xff]
      %v1825 = vld [vmem:[#allocation2 + $0x2a0] sm:$0xff]
      %v1826 = vld [vmem:[#allocation2 + $0x2a8] sm:$0xff]
      %v1827 = vld [vmem:[#allocation2 + $0x2b0] sm:$0xff]
      %v1828 = vld [vmem:[#allocation2 + $0x2b8] sm:$0xff]
      %v1829 = vld [vmem:[#allocation2 + $0x2c0] sm:$0xff]
      %v1830 = vld [vmem:[#allocation2 + $0x2c8] sm:$0xff]
      %v1831 = vld [vmem:[#allocation2 + $0x2d0] sm:$0xff]
      %v1832 = vld [vmem:[#allocation2 + $0x2d8] sm:$0xff]
      %v1833 = vld [vmem:[#allocation2 + $0x2e0] sm:$0xff]
      %v1834 = vld [vmem:[#allocation2 + $0x2e8] sm:$0xff]
      %v1835 = vld [vmem:[#allocation2 + $0x2f0] sm:$0xff]
      %v1836 = vld [vmem:[#allocation2 + $0x2f8] sm:$0xff]
      %v1837 = vld [vmem:[%s7] sm:$0xff]
      %v1838 = vld [vmem:[%s7 + $0x8] sm:$0xff]
      %v1839 = vld [vmem:[%s7 + $0x10] sm:$0xff]
      %v1840 = vld [vmem:[%s7 + $0x18] sm:$0xff]
      %v1841 = vld [vmem:[%s7 + $0x20] sm:$0xff]
      %v1842 = vld [vmem:[%s7 + $0x28] sm:$0xff]
      %v1843 = vld [vmem:[%s7 + $0x30] sm:$0xff]
      %v1844 = vld [vmem:[%s7 + $0x38] sm:$0xff]
      %v1845 = vld [vmem:[%s7 + $0x40] sm:$0xff]
      %v1846 = vld [vmem:[%s7 + $0x48] sm:$0xff]
      %v1847 = vld [vmem:[%s7 + $0x50] sm:$0xff]
      %v1848 = vld [vmem:[%s7 + $0x58] sm:$0xff]
      %v1849 = vld [vmem:[#allocation2 + $0x300] sm:$0xff]
      %v1850 = vld [vmem:[#allocation2 + $0x308] sm:$0xff]
      %v1851 = vld [vmem:[#allocation2 + $0x310] sm:$0xff]
      %v1852 = vld [vmem:[#allocation2 + $0x318] sm:$0xff]
      %v1853 = vld [vmem:[#allocation2 + $0x320] sm:$0xff]
      %v1854 = vld [vmem:[#allocation2 + $0x328] sm:$0xff]
      %s1855 = scalar_lea.vmem %s7, 96
      %v1856 = vld [vmem:[%s1855] sm:$0xff]
      %v1857 = vld [vmem:[%s1855 + $0x8] sm:$0xff]
      %v1858 = vld [vmem:[%s1855 + $0x10] sm:$0xff]
      %v1859 = vld [vmem:[%s1855 + $0x18] sm:$0xff]
      %v1860 = vld [vmem:[%s1855 + $0x20] sm:$0xff]
      %v1861 = vld [vmem:[%s1855 + $0x28] sm:$0xff]
      %v1862 = vld [vmem:[%s1855 + $0x30] sm:$0xff]
      %v1863 = vld [vmem:[%s1855 + $0x38] sm:$0xff]
      %v1864 = vld [vmem:[%s1855 + $0x40] sm:$0xff]
      %v1865 = vld [vmem:[%s1855 + $0x48] sm:$0xff]
      %v1866 = vld [vmem:[%s1855 + $0x50] sm:$0xff]
      %v1867 = vld [vmem:[%s1855 + $0x58] sm:$0xff]
      %1868 = vmatprep.subr.mxu0 %v1793
      %1869 = vmatpush1.xpose.msra.mxu0 %v1792
      %1870 = vmatprep.subr.mxu0 %v1790
      %1871 = vmatpush1.xpose.msra.mxu0 %v1789
      %1872 = vmatprep.subr.mxu0 %v1787
      %1873 = vmatpush1.xpose.msra.mxu0 %v1786
      %1874 = vmatprep.subr.mxu0 %v1784
      %1875 = vmatpush1.xpose.msra.mxu0 %v1783
      %1876 = vmatprep.subr.mxu0 %v1781
      %1877 = vmatpush1.xpose.msra.mxu0 %v1780
      %1878 = vmatprep.subr.mxu0 %v1778
      %1879 = vmatpush1.xpose.msra.mxu0 %v1777
      %1880 = vmatprep.subr.mxu0 %v1775
      %1881 = vmatpush1.xpose.msra.mxu0 %v1774
      %1882 = vmatprep.subr.mxu0 %v1772
      %1883 = vmatpush1.xpose.msra.mxu0 %v1771
      %1884 = vmatprep.subr.mxu0 %v1769
      %1885 = vmatpush1.xpose.msra.mxu0 %v1768
      %1886 = vmatprep.subr.mxu0 %v1766
      %1887 = vmatpush1.xpose.msra.mxu0 %v1765
      %1888 = vmatprep.subr.mxu0 %v1763
      %1889 = vmatpush1.xpose.msra.mxu0 %v1762
      %1890 = vmatprep.subr.mxu0 %v1760
      %1891 = vmatpush1.xpose.msra.mxu0 %v1759
      %1892 = vmatprep.subr.mxu0 %v1757
      %1893 = vmatpush1.xpose.msra.mxu0 %v1756
      %1894 = vmatprep.subr.mxu0 %v1754
      %1895 = vmatpush1.xpose.msra.mxu0 %v1753
      %1896 = vmatprep.subr.mxu0 %v1751
      %1897 = vmatpush1.xpose.msra.mxu0 %v1750
      %1898 = vmatprep.subr.mxu0 %v1748
      %1899 = vmatpush1.xpose.msra.mxu0 %v1747
      %1900 = vmatprep.subr.mxu0 %v1853
      %1901 = vmatpush2.xpose.msra.mxu0 %v1852
      %1902 = vmatprep.subr.mxu0 %v1850
      %1903 = vmatpush2.xpose.msra.mxu0 %v1849
      %1904 = vmatprep.subr.mxu0 %v1835
      %1905 = vmatpush2.xpose.msra.mxu0 %v1834
      %1906 = vmatprep.subr.mxu0 %v1832
      %1907 = vmatpush2.xpose.msra.mxu0 %v1831
      %1908 = vmatprep.subr.mxu0 %v1829
      %1909 = vmatpush2.xpose.msra.mxu0 %v1828
      %1910 = vmatprep.subr.mxu0 %v1826
      %1911 = vmatpush2.xpose.msra.mxu0 %v1825
      %1912 = vmatprep.subr.mxu0 %v1823
      %1913 = vmatpush2.xpose.msra.mxu0 %v1822
      %1914 = vmatprep.subr.mxu0 %v1820
      %1915 = vmatpush2.xpose.msra.mxu0 %v1819
      %1916 = vmatprep.subr.mxu0 %v1817
      %1917 = vmatpush2.xpose.msra.mxu0 %v1816
      %1918 = vmatprep.subr.mxu0 %v1814
      %1919 = vmatpush2.xpose.msra.mxu0 %v1813
      %1920 = vmatprep.subr.mxu0 %v1811
      %1921 = vmatpush2.xpose.msra.mxu0 %v1810
      %1922 = vmatprep.subr.mxu0 %v1808
      %1923 = vmatpush2.xpose.msra.mxu0 %v1807
      %1924 = vmatprep.subr.mxu0 %v1805
      %1925 = vmatpush2.xpose.msra.mxu0 %v1804
      %1926 = vmatprep.subr.mxu0 %v1802
      %1927 = vmatpush2.xpose.msra.mxu0 %v1801
      %1928 = vmatprep.subr.mxu0 %v1799
      %1929 = vmatpush2.xpose.msra.mxu0 %v1798
      %1930 = vmatprep.subr.mxu0 %v1796
      %1931 = vmatpush2.xpose.msra.mxu0 %v1795
      %1932 = vmatprep.mubr.f32.mxu0 %v1857
      %1933 = vmatmul.mubr.f32.gmra.mxu0 %v1856
      %v1934 = vpop.f32.mrf.mxu0
      %v1935 = vadd.f32 0.0, %v1934
      %v1936 = vpop.f32.mrf.mxu0
      %v1937 = vadd.f32 0.0, %v1936
      %1938 = vmatprep.mubr.f32.mxu0 %v1860
      %1939 = vmatmul.mubr.f32.gmra.mxu0 %v1859
      %v1940 = vpop.f32.mrf.mxu0
      %v1941 = vadd.f32 0.0, %v1940
      %v1942 = vpop.f32.mrf.mxu0
      %v1943 = vadd.f32 0.0, %v1942
      %1944 = vmatprep.mubr.f32.mxu0 %v1863
      %1945 = vmatmul.mubr.f32.gmra.mxu0 %v1862
      %v1946 = vpop.f32.mrf.mxu0
      %v1947 = vadd.f32 0.0, %v1946
      %v1948 = vpop.f32.mrf.mxu0
      %v1949 = vadd.f32 0.0, %v1948
      %1950 = vmatprep.mubr.f32.mxu0 %v1866
      %1951 = vmatmul.mubr.f32.gmra.mxu0 %v1865
      %v1952 = vpop.f32.mrf.mxu0
      %v1953 = vadd.f32 0.0, %v1952
      %v1954 = vpop.f32.mrf.mxu0
      %v1955 = vadd.f32 0.0, %v1954
      %1956 = vdwg.mxu0
      %1957 = vmatprep.subr.mxu0 0.0
      %1958 = vmatpush1.xpose.msra.mxu0 %v1794
      %1959 = vmatprep.subr.mxu0 0.0
      %1960 = vmatpush1.xpose.msra.mxu0 %v1791
      %1961 = vmatprep.subr.mxu0 0.0
      %1962 = vmatpush1.xpose.msra.mxu0 %v1788
      %1963 = vmatprep.subr.mxu0 0.0
      %1964 = vmatpush1.xpose.msra.mxu0 %v1785
      %1965 = vmatprep.subr.mxu0 0.0
      %1966 = vmatpush1.xpose.msra.mxu0 %v1782
      %1967 = vmatprep.subr.mxu0 0.0
      %1968 = vmatpush1.xpose.msra.mxu0 %v1779
      %1969 = vmatprep.subr.mxu0 0.0
      %1970 = vmatpush1.xpose.msra.mxu0 %v1776
      %1971 = vmatprep.subr.mxu0 0.0
      %1972 = vmatpush1.xpose.msra.mxu0 %v1773
      %1973 = vmatprep.subr.mxu0 0.0
      %1974 = vmatpush1.xpose.msra.mxu0 %v1770
      %1975 = vmatprep.subr.mxu0 0.0
      %1976 = vmatpush1.xpose.msra.mxu0 %v1767
      %1977 = vmatprep.subr.mxu0 0.0
      %1978 = vmatpush1.xpose.msra.mxu0 %v1764
      %1979 = vmatprep.subr.mxu0 0.0
      %1980 = vmatpush1.xpose.msra.mxu0 %v1761
      %1981 = vmatprep.subr.mxu0 0.0
      %1982 = vmatpush1.xpose.msra.mxu0 %v1758
      %1983 = vmatprep.subr.mxu0 0.0
      %1984 = vmatpush1.xpose.msra.mxu0 %v1755
      %1985 = vmatprep.subr.mxu0 0.0
      %1986 = vmatpush1.xpose.msra.mxu0 %v1752
      %1987 = vmatprep.subr.mxu0 0.0
      %1988 = vmatpush1.xpose.msra.mxu0 %v1749
      %1989 = vmatprep.subr.mxu0 0.0
      %1990 = vmatpush2.xpose.msra.mxu0 %v1854
      %1991 = vmatprep.subr.mxu0 0.0
      %1992 = vmatpush2.xpose.msra.mxu0 %v1851
      %1993 = vmatprep.subr.mxu0 0.0
      %1994 = vmatpush2.xpose.msra.mxu0 %v1836
      %1995 = vmatprep.subr.mxu0 0.0
      %1996 = vmatpush2.xpose.msra.mxu0 %v1833
      %1997 = vmatprep.subr.mxu0 0.0
      %1998 = vmatpush2.xpose.msra.mxu0 %v1830
      %1999 = vmatprep.subr.mxu0 0.0
      %2000 = vmatpush2.xpose.msra.mxu0 %v1827
      %2001 = vmatprep.subr.mxu0 0.0
      %2002 = vmatpush2.xpose.msra.mxu0 %v1824
      %2003 = vmatprep.subr.mxu0 0.0
      %2004 = vmatpush2.xpose.msra.mxu0 %v1821
      %2005 = vmatprep.subr.mxu0 0.0
      %2006 = vmatpush2.xpose.msra.mxu0 %v1818
      %2007 = vmatprep.subr.mxu0 0.0
      %2008 = vmatpush2.xpose.msra.mxu0 %v1815
      %2009 = vmatprep.subr.mxu0 0.0
      %2010 = vmatpush2.xpose.msra.mxu0 %v1812
      %2011 = vmatprep.subr.mxu0 0.0
      %2012 = vmatpush2.xpose.msra.mxu0 %v1809
      %2013 = vmatprep.subr.mxu0 0.0
      %2014 = vmatpush2.xpose.msra.mxu0 %v1806
      %2015 = vmatprep.subr.mxu0 0.0
      %2016 = vmatpush2.xpose.msra.mxu0 %v1803
      %2017 = vmatprep.subr.mxu0 0.0
      %2018 = vmatpush2.xpose.msra.mxu0 %v1800
      %2019 = vmatprep.subr.mxu0 0.0
      %2020 = vmatpush2.xpose.msra.mxu0 %v1797
      %2021 = vmatprep.mubr.f32.mxu0 0.0
      %2022 = vmatmul.mubr.f32.gmra.mxu0 %v1858
      %v2023 = vpop.f32.mrf.mxu0
      %v2024 = vadd.f32 %v1935, %v2023
      %v2025 = vpop.f32.mrf.mxu0
      %v2026 = vadd.f32 %v1937, %v2025
      %2027 = vmatprep.mubr.f32.mxu0 0.0
      %2028 = vmatmul.mubr.f32.gmra.mxu0 %v1861
      %v2029 = vpop.f32.mrf.mxu0
      %v2030 = vadd.f32 %v1941, %v2029
      %v2031 = vpop.f32.mrf.mxu0
      %v2032 = vadd.f32 %v1943, %v2031
      %2033 = vmatprep.mubr.f32.mxu0 0.0
      %2034 = vmatmul.mubr.f32.gmra.mxu0 %v1864
      %v2035 = vpop.f32.mrf.mxu0
      %v2036 = vadd.f32 %v1947, %v2035
      %v2037 = vpop.f32.mrf.mxu0
      %v2038 = vadd.f32 %v1949, %v2037
      %2039 = vmatprep.mubr.f32.mxu0 0.0
      %2040 = vmatmul.mubr.f32.gmra.mxu0 %v1867
      %v2041 = vpop.f32.mrf.mxu0
      %v2042 = vadd.f32 %v1953, %v2041
      %v2043 = vpop.f32.mrf.mxu0
      %v2044 = vadd.f32 %v1955, %v2043
      %2045 = vdwg.mxu0
      %2046 = vmatprep.subr.mxu0 %v1787
      %2047 = vmatpush1.xpose.msra.mxu0 %v1786
      %2048 = vmatprep.subr.mxu0 %v1784
      %2049 = vmatpush1.xpose.msra.mxu0 %v1783
      %2050 = vmatprep.subr.mxu0 %v1781
      %2051 = vmatpush1.xpose.msra.mxu0 %v1780
      %2052 = vmatprep.subr.mxu0 %v1778
      %2053 = vmatpush1.xpose.msra.mxu0 %v1777
      %2054 = vmatprep.subr.mxu0 %v1775
      %2055 = vmatpush1.xpose.msra.mxu0 %v1774
      %2056 = vmatprep.subr.mxu0 %v1772
      %2057 = vmatpush1.xpose.msra.mxu0 %v1771
      %2058 = vmatprep.subr.mxu0 %v1769
      %2059 = vmatpush1.xpose.msra.mxu0 %v1768
      %2060 = vmatprep.subr.mxu0 %v1766
      %2061 = vmatpush1.xpose.msra.mxu0 %v1765
      %2062 = vmatprep.subr.mxu0 %v1763
      %2063 = vmatpush1.xpose.msra.mxu0 %v1762
      %2064 = vmatprep.subr.mxu0 %v1760
      %2065 = vmatpush1.xpose.msra.mxu0 %v1759
      %2066 = vmatprep.subr.mxu0 %v1757
      %2067 = vmatpush1.xpose.msra.mxu0 %v1756
      %2068 = vmatprep.subr.mxu0 %v1754
      %2069 = vmatpush1.xpose.msra.mxu0 %v1753
      %2070 = vmatprep.subr.mxu0 %v1751
      %2071 = vmatpush1.xpose.msra.mxu0 %v1750
      %2072 = vmatprep.subr.mxu0 %v1748
      %2073 = vmatpush1.xpose.msra.mxu0 %v1747
      %2074 = vmatprep.subr.mxu0 %v1745
      %2075 = vmatpush1.xpose.msra.mxu0 %v1744
      %2076 = vmatprep.subr.mxu0 %v1742
      %2077 = vmatpush1.xpose.msra.mxu0 %v1741
      %2078 = vmatprep.subr.mxu0 %v1835
      %2079 = vmatpush2.xpose.msra.mxu0 %v1834
      %2080 = vmatprep.subr.mxu0 %v1832
      %2081 = vmatpush2.xpose.msra.mxu0 %v1831
      %2082 = vmatprep.subr.mxu0 %v1829
      %2083 = vmatpush2.xpose.msra.mxu0 %v1828
      %2084 = vmatprep.subr.mxu0 %v1826
      %2085 = vmatpush2.xpose.msra.mxu0 %v1825
      %2086 = vmatprep.subr.mxu0 %v1823
      %2087 = vmatpush2.xpose.msra.mxu0 %v1822
      %2088 = vmatprep.subr.mxu0 %v1820
      %2089 = vmatpush2.xpose.msra.mxu0 %v1819
      %2090 = vmatprep.subr.mxu0 %v1817
      %2091 = vmatpush2.xpose.msra.mxu0 %v1816
      %2092 = vmatprep.subr.mxu0 %v1814
      %2093 = vmatpush2.xpose.msra.mxu0 %v1813
      %2094 = vmatprep.subr.mxu0 %v1811
      %2095 = vmatpush2.xpose.msra.mxu0 %v1810
      %2096 = vmatprep.subr.mxu0 %v1808
      %2097 = vmatpush2.xpose.msra.mxu0 %v1807
      %2098 = vmatprep.subr.mxu0 %v1805
      %2099 = vmatpush2.xpose.msra.mxu0 %v1804
      %2100 = vmatprep.subr.mxu0 %v1802
      %2101 = vmatpush2.xpose.msra.mxu0 %v1801
      %2102 = vmatprep.subr.mxu0 %v1799
      %2103 = vmatpush2.xpose.msra.mxu0 %v1798
      %2104 = vmatprep.subr.mxu0 %v1796
      %2105 = vmatpush2.xpose.msra.mxu0 %v1795
      %2106 = vmatprep.subr.mxu0 %v1793
      %2107 = vmatpush2.xpose.msra.mxu0 %v1792
      %2108 = vmatprep.subr.mxu0 %v1790
      %2109 = vmatpush2.xpose.msra.mxu0 %v1789
      %2110 = vmatprep.mubr.f32.mxu0 %v1838
      %2111 = vmatmul.mubr.f32.gmra.mxu0 %v1837
      %v2112 = vpop.f32.mrf.mxu0
      %v2113 = vadd.f32 %v2024, %v2112
      %v2114 = vpop.f32.mrf.mxu0
      %v2115 = vadd.f32 %v2026, %v2114
      %2116 = vmatprep.mubr.f32.mxu0 %v1841
      %2117 = vmatmul.mubr.f32.gmra.mxu0 %v1840
      %v2118 = vpop.f32.mrf.mxu0
      %v2119 = vadd.f32 %v2030, %v2118
      %v2120 = vpop.f32.mrf.mxu0
      %v2121 = vadd.f32 %v2032, %v2120
      %2122 = vmatprep.mubr.f32.mxu0 %v1844
      %2123 = vmatmul.mubr.f32.gmra.mxu0 %v1843
      %v2124 = vpop.f32.mrf.mxu0
      %v2125 = vadd.f32 %v2036, %v2124
      %v2126 = vpop.f32.mrf.mxu0
      %v2127 = vadd.f32 %v2038, %v2126
      %2128 = vmatprep.mubr.f32.mxu0 %v1847
      %2129 = vmatmul.mubr.f32.gmra.mxu0 %v1846
      %v2130 = vpop.f32.mrf.mxu0
      %v2131 = vadd.f32 %v2042, %v2130
      %v2132 = vpop.f32.mrf.mxu0
      %v2133 = vadd.f32 %v2044, %v2132
      %2134 = vdwg.mxu0
      %2135 = vmatprep.subr.mxu0 0.0
      %2136 = vmatpush1.xpose.msra.mxu0 %v1788
      %2137 = vmatprep.subr.mxu0 0.0
      %2138 = vmatpush1.xpose.msra.mxu0 %v1785
      %2139 = vmatprep.subr.mxu0 0.0
      %2140 = vmatpush1.xpose.msra.mxu0 %v1782
      %2141 = vmatprep.subr.mxu0 0.0
      %2142 = vmatpush1.xpose.msra.mxu0 %v1779
      %2143 = vmatprep.subr.mxu0 0.0
      %2144 = vmatpush1.xpose.msra.mxu0 %v1776
      %2145 = vmatprep.subr.mxu0 0.0
      %2146 = vmatpush1.xpose.msra.mxu0 %v1773
      %2147 = vmatprep.subr.mxu0 0.0
      %2148 = vmatpush1.xpose.msra.mxu0 %v1770
      %2149 = vmatprep.subr.mxu0 0.0
      %2150 = vmatpush1.xpose.msra.mxu0 %v1767
      %2151 = vmatprep.subr.mxu0 0.0
      %2152 = vmatpush1.xpose.msra.mxu0 %v1764
      %2153 = vmatprep.subr.mxu0 0.0
      %2154 = vmatpush1.xpose.msra.mxu0 %v1761
      %2155 = vmatprep.subr.mxu0 0.0
      %2156 = vmatpush1.xpose.msra.mxu0 %v1758
      %2157 = vmatprep.subr.mxu0 0.0
      %2158 = vmatpush1.xpose.msra.mxu0 %v1755
      %2159 = vmatprep.subr.mxu0 0.0
      %2160 = vmatpush1.xpose.msra.mxu0 %v1752
      %2161 = vmatprep.subr.mxu0 0.0
      %2162 = vmatpush1.xpose.msra.mxu0 %v1749
      %2163 = vmatprep.subr.mxu0 0.0
      %2164 = vmatpush1.xpose.msra.mxu0 %v1746
      %2165 = vmatprep.subr.mxu0 0.0
      %2166 = vmatpush1.xpose.msra.mxu0 %v1743
      %2167 = vmatprep.subr.mxu0 0.0
      %2168 = vmatpush2.xpose.msra.mxu0 %v1836
      %2169 = vmatprep.subr.mxu0 0.0
      %2170 = vmatpush2.xpose.msra.mxu0 %v1833
      %2171 = vmatprep.subr.mxu0 0.0
      %2172 = vmatpush2.xpose.msra.mxu0 %v1830
      %2173 = vmatprep.subr.mxu0 0.0
      %2174 = vmatpush2.xpose.msra.mxu0 %v1827
      %2175 = vmatprep.subr.mxu0 0.0
      %2176 = vmatpush2.xpose.msra.mxu0 %v1824
      %2177 = vmatprep.subr.mxu0 0.0
      %2178 = vmatpush2.xpose.msra.mxu0 %v1821
      %2179 = vmatprep.subr.mxu0 0.0
      %2180 = vmatpush2.xpose.msra.mxu0 %v1818
      %2181 = vmatprep.subr.mxu0 0.0
      %2182 = vmatpush2.xpose.msra.mxu0 %v1815
      %2183 = vmatprep.subr.mxu0 0.0
      %2184 = vmatpush2.xpose.msra.mxu0 %v1812
      %2185 = vmatprep.subr.mxu0 0.0
      %2186 = vmatpush2.xpose.msra.mxu0 %v1809
      %2187 = vmatprep.subr.mxu0 0.0
      %2188 = vmatpush2.xpose.msra.mxu0 %v1806
      %2189 = vmatprep.subr.mxu0 0.0
      %2190 = vmatpush2.xpose.msra.mxu0 %v1803
      %2191 = vmatprep.subr.mxu0 0.0
      %2192 = vmatpush2.xpose.msra.mxu0 %v1800
      %2193 = vmatprep.subr.mxu0 0.0
      %2194 = vmatpush2.xpose.msra.mxu0 %v1797
      %2195 = vmatprep.subr.mxu0 0.0
      %2196 = vmatpush2.xpose.msra.mxu0 %v1794
      %2197 = vmatprep.subr.mxu0 0.0
      %2198 = vmatpush2.xpose.msra.mxu0 %v1791
      %2199 = vmatprep.mubr.f32.mxu0 0.0
      %2200 = vmatmul.mubr.f32.gmra.mxu0 %v1839
      %v2201 = vpop.f32.mrf.mxu0
      %v2202 = vadd.f32 %v2113, %v2201
      %v2203 = vpop.f32.mrf.mxu0
      %v2204 = vadd.f32 %v2115, %v2203
      %2205 = vmatprep.mubr.f32.mxu0 0.0
      %2206 = vmatmul.mubr.f32.gmra.mxu0 %v1842
      %v2207 = vpop.f32.mrf.mxu0
      %v2208 = vadd.f32 %v2119, %v2207
      %v2209 = vpop.f32.mrf.mxu0
      %v2210 = vadd.f32 %v2121, %v2209
      %2211 = vmatprep.mubr.f32.mxu0 0.0
      %2212 = vmatmul.mubr.f32.gmra.mxu0 %v1845
      %v2213 = vpop.f32.mrf.mxu0
      %v2214 = vadd.f32 %v2125, %v2213
      %v2215 = vpop.f32.mrf.mxu0
      %v2216 = vadd.f32 %v2127, %v2215
      %2217 = vmatprep.mubr.f32.mxu0 0.0
      %2218 = vmatmul.mubr.f32.gmra.mxu0 %v1848
      %v2219 = vpop.f32.mrf.mxu0
      %v2220 = vadd.f32 %v2131, %v2219
      %v2221 = vpop.f32.mrf.mxu0
      %v2222 = vadd.f32 %v2133, %v2221
      %2223 = vdwg.mxu0
      %v2224 = vld [vmem:[#allocation2 + $0x60] sm:$0xff]
      %v2225 = vld [vmem:[#allocation2 + $0x68] sm:$0xff]
      %v2226 = vld [vmem:[#allocation2 + $0x70] sm:$0xff]
      %v2227 = vld [vmem:[#allocation2 + $0x78] sm:$0xff]
      %v2228 = vld [vmem:[#allocation2 + $0x80] sm:$0xff]
      %v2229 = vld [vmem:[#allocation2 + $0x88] sm:$0xff]
      %v2230 = vld [vmem:[#allocation2 + $0x90] sm:$0xff]
      %v2231 = vld [vmem:[#allocation2 + $0x98] sm:$0xff]
      %v2232 = vld [vmem:[#allocation2 + $0xa0] sm:$0xff]
      %v2233 = vld [vmem:[#allocation2 + $0xa8] sm:$0xff]
      %v2234 = vld [vmem:[#allocation2 + $0xb0] sm:$0xff]
      %v2235 = vld [vmem:[#allocation2 + $0xb8] sm:$0xff]
      %v2236 = vld [vmem:[#allocation2 + $0xc0] sm:$0xff]
      %v2237 = vld [vmem:[#allocation2 + $0xc8] sm:$0xff]
      %v2238 = vld [vmem:[#allocation2 + $0xd0] sm:$0xff]
      %v2239 = vld [vmem:[#allocation2 + $0xd8] sm:$0xff]
      %v2240 = vld [vmem:[#allocation2 + $0xe0] sm:$0xff]
      %v2241 = vld [vmem:[#allocation2 + $0xe8] sm:$0xff]
      %v2242 = vld [vmem:[#allocation2 + $0xf0] sm:$0xff]
      %v2243 = vld [vmem:[#allocation2 + $0xf8] sm:$0xff]
      %v2244 = vld [vmem:[#allocation2 + $0x100] sm:$0xff]
      %v2245 = vld [vmem:[#allocation2 + $0x108] sm:$0xff]
      %v2246 = vld [vmem:[#allocation2 + $0x110] sm:$0xff]
      %v2247 = vld [vmem:[#allocation2 + $0x118] sm:$0xff]
      %v2248 = vld [vmem:[#allocation2 + $0x120] sm:$0xff]
      %v2249 = vld [vmem:[#allocation2 + $0x128] sm:$0xff]
      %v2250 = vld [vmem:[#allocation2 + $0x130] sm:$0xff]
      %v2251 = vld [vmem:[#allocation2 + $0x138] sm:$0xff]
      %v2252 = vld [vmem:[#allocation2 + $0x140] sm:$0xff]
      %v2253 = vld [vmem:[#allocation2 + $0x148] sm:$0xff]
      %v2254 = vld [vmem:[#allocation2 + $0x150] sm:$0xff]
      %v2255 = vld [vmem:[#allocation2 + $0x158] sm:$0xff]
      %v2256 = vld [vmem:[#allocation2 + $0x160] sm:$0xff]
      %v2257 = vld [vmem:[#allocation2 + $0x168] sm:$0xff]
      %v2258 = vld [vmem:[#allocation2 + $0x170] sm:$0xff]
      %v2259 = vld [vmem:[#allocation2 + $0x178] sm:$0xff]
      %v2260 = vld [vmem:[#allocation2 + $0x180] sm:$0xff]
      %v2261 = vld [vmem:[#allocation2 + $0x188] sm:$0xff]
      %v2262 = vld [vmem:[#allocation2 + $0x190] sm:$0xff]
      %v2263 = vld [vmem:[#allocation2 + $0x198] sm:$0xff]
      %v2264 = vld [vmem:[#allocation2 + $0x1a0] sm:$0xff]
      %v2265 = vld [vmem:[#allocation2 + $0x1a8] sm:$0xff]
      %v2266 = vld [vmem:[#allocation2 + $0x1b0] sm:$0xff]
      %v2267 = vld [vmem:[#allocation2 + $0x1b8] sm:$0xff]
      %v2268 = vld [vmem:[#allocation2 + $0x1c0] sm:$0xff]
      %v2269 = vld [vmem:[#allocation2 + $0x1c8] sm:$0xff]
      %v2270 = vld [vmem:[#allocation2 + $0x1d0] sm:$0xff]
      %v2271 = vld [vmem:[#allocation2 + $0x1d8] sm:$0xff]
      %v2272 = vld [vmem:[#allocation2 + $0x1e0] sm:$0xff]
      %v2273 = vld [vmem:[#allocation2 + $0x1e8] sm:$0xff]
      %v2274 = vld [vmem:[#allocation2 + $0x1f0] sm:$0xff]
      %v2275 = vld [vmem:[#allocation2 + $0x1f8] sm:$0xff]
      %v2276 = vld [vmem:[#allocation2 + $0x200] sm:$0xff]
      %v2277 = vld [vmem:[#allocation2 + $0x208] sm:$0xff]
      %v2278 = vld [vmem:[#allocation2 + $0x210] sm:$0xff]
      %v2279 = vld [vmem:[#allocation2 + $0x218] sm:$0xff]
      %v2280 = vld [vmem:[#allocation2 + $0x220] sm:$0xff]
      %v2281 = vld [vmem:[#allocation2 + $0x228] sm:$0xff]
      %v2282 = vld [vmem:[#allocation2 + $0x230] sm:$0xff]
      %v2283 = vld [vmem:[#allocation2 + $0x238] sm:$0xff]
      %v2284 = vld [vmem:[#allocation2 + $0x240] sm:$0xff]
      %v2285 = vld [vmem:[#allocation2 + $0x248] sm:$0xff]
      %v2286 = vld [vmem:[#allocation2 + $0x250] sm:$0xff]
      %v2287 = vld [vmem:[#allocation2 + $0x258] sm:$0xff]
      %v2288 = vld [vmem:[#allocation2 + $0x260] sm:$0xff]
      %v2289 = vld [vmem:[#allocation2 + $0x268] sm:$0xff]
      %v2290 = vld [vmem:[#allocation2 + $0x270] sm:$0xff]
      %v2291 = vld [vmem:[#allocation2 + $0x278] sm:$0xff]
      %v2292 = vld [vmem:[#allocation2 + $0x280] sm:$0xff]
      %v2293 = vld [vmem:[#allocation2 + $0x288] sm:$0xff]
      %v2294 = vld [vmem:[#allocation2 + $0x290] sm:$0xff]
      %v2295 = vld [vmem:[#allocation2 + $0x298] sm:$0xff]
      %v2296 = vld [vmem:[#allocation2 + $0x2a0] sm:$0xff]
      %v2297 = vld [vmem:[#allocation2 + $0x2a8] sm:$0xff]
      %v2298 = vld [vmem:[#allocation2 + $0x2b0] sm:$0xff]
      %v2299 = vld [vmem:[#allocation2 + $0x2b8] sm:$0xff]
      %v2300 = vld [vmem:[#allocation2 + $0x2c0] sm:$0xff]
      %v2301 = vld [vmem:[#allocation2 + $0x2c8] sm:$0xff]
      %v2302 = vld [vmem:[#allocation2 + $0x2d0] sm:$0xff]
      %v2303 = vld [vmem:[#allocation2 + $0x2d8] sm:$0xff]
      %v2304 = vld [vmem:[#allocation2 + $0x2e0] sm:$0xff]
      %v2305 = vld [vmem:[#allocation2 + $0x2e8] sm:$0xff]
      %v2306 = vld [vmem:[#allocation2 + $0x2f0] sm:$0xff]
      %v2307 = vld [vmem:[#allocation2 + $0x2f8] sm:$0xff]
      %v2308 = vld [vmem:[#allocation2 + $0x300] sm:$0xff]
      %v2309 = vld [vmem:[#allocation2 + $0x308] sm:$0xff]
      %v2310 = vld [vmem:[#allocation2 + $0x310] sm:$0xff]
      %v2311 = vld [vmem:[#allocation2 + $0x318] sm:$0xff]
      %v2312 = vld [vmem:[#allocation2 + $0x320] sm:$0xff]
      %v2313 = vld [vmem:[#allocation2 + $0x328] sm:$0xff]
      %v2314 = vld [vmem:[#allocation2 + $0x330] sm:$0xff]
      %v2315 = vld [vmem:[#allocation2 + $0x338] sm:$0xff]
      %v2316 = vld [vmem:[#allocation2 + $0x340] sm:$0xff]
      %v2317 = vld [vmem:[#allocation2 + $0x348] sm:$0xff]
      %v2318 = vld [vmem:[#allocation2 + $0x350] sm:$0xff]
      %v2319 = vld [vmem:[#allocation2 + $0x358] sm:$0xff]
      %s2320 = scalar_lea.vmem %s7, 192
      %v2321 = vld [vmem:[%s2320] sm:$0xff]
      %v2322 = vld [vmem:[%s2320 + $0x8] sm:$0xff]
      %v2323 = vld [vmem:[%s2320 + $0x10] sm:$0xff]
      %v2324 = vld [vmem:[%s2320 + $0x18] sm:$0xff]
      %v2325 = vld [vmem:[%s2320 + $0x20] sm:$0xff]
      %v2326 = vld [vmem:[%s2320 + $0x28] sm:$0xff]
      %v2327 = vld [vmem:[%s2320 + $0x30] sm:$0xff]
      %v2328 = vld [vmem:[%s2320 + $0x38] sm:$0xff]
      %v2329 = vld [vmem:[%s2320 + $0x40] sm:$0xff]
      %v2330 = vld [vmem:[%s2320 + $0x48] sm:$0xff]
      %v2331 = vld [vmem:[%s2320 + $0x50] sm:$0xff]
      %v2332 = vld [vmem:[%s2320 + $0x58] sm:$0xff]
      %2333 = vmatprep.subr.mxu0 %v2270
      %2334 = vmatpush1.xpose.msra.mxu0 %v2269
      %2335 = vmatprep.subr.mxu0 %v2267
      %2336 = vmatpush1.xpose.msra.mxu0 %v2266
      %2337 = vmatprep.subr.mxu0 %v2264
      %2338 = vmatpush1.xpose.msra.mxu0 %v2263
      %2339 = vmatprep.subr.mxu0 %v2261
      %2340 = vmatpush1.xpose.msra.mxu0 %v2260
      %2341 = vmatprep.subr.mxu0 %v2258
      %2342 = vmatpush1.xpose.msra.mxu0 %v2257
      %2343 = vmatprep.subr.mxu0 %v2255
      %2344 = vmatpush1.xpose.msra.mxu0 %v2254
      %2345 = vmatprep.subr.mxu0 %v2252
      %2346 = vmatpush1.xpose.msra.mxu0 %v2251
      %2347 = vmatprep.subr.mxu0 %v2249
      %2348 = vmatpush1.xpose.msra.mxu0 %v2248
      %2349 = vmatprep.subr.mxu0 %v2246
      %2350 = vmatpush1.xpose.msra.mxu0 %v2245
      %2351 = vmatprep.subr.mxu0 %v2243
      %2352 = vmatpush1.xpose.msra.mxu0 %v2242
      %2353 = vmatprep.subr.mxu0 %v2240
      %2354 = vmatpush1.xpose.msra.mxu0 %v2239
      %2355 = vmatprep.subr.mxu0 %v2237
      %2356 = vmatpush1.xpose.msra.mxu0 %v2236
      %2357 = vmatprep.subr.mxu0 %v2234
      %2358 = vmatpush1.xpose.msra.mxu0 %v2233
      %2359 = vmatprep.subr.mxu0 %v2231
      %2360 = vmatpush1.xpose.msra.mxu0 %v2230
      %2361 = vmatprep.subr.mxu0 %v2228
      %2362 = vmatpush1.xpose.msra.mxu0 %v2227
      %2363 = vmatprep.subr.mxu0 %v2225
      %2364 = vmatpush1.xpose.msra.mxu0 %v2224
      %2365 = vmatprep.subr.mxu0 %v2318
      %2366 = vmatpush2.xpose.msra.mxu0 %v2317
      %2367 = vmatprep.subr.mxu0 %v2315
      %2368 = vmatpush2.xpose.msra.mxu0 %v2314
      %2369 = vmatprep.subr.mxu0 %v2312
      %2370 = vmatpush2.xpose.msra.mxu0 %v2311
      %2371 = vmatprep.subr.mxu0 %v2309
      %2372 = vmatpush2.xpose.msra.mxu0 %v2308
      %2373 = vmatprep.subr.mxu0 %v2306
      %2374 = vmatpush2.xpose.msra.mxu0 %v2305
      %2375 = vmatprep.subr.mxu0 %v2303
      %2376 = vmatpush2.xpose.msra.mxu0 %v2302
      %2377 = vmatprep.subr.mxu0 %v2300
      %2378 = vmatpush2.xpose.msra.mxu0 %v2299
      %2379 = vmatprep.subr.mxu0 %v2297
      %2380 = vmatpush2.xpose.msra.mxu0 %v2296
      %2381 = vmatprep.subr.mxu0 %v2294
      %2382 = vmatpush2.xpose.msra.mxu0 %v2293
      %2383 = vmatprep.subr.mxu0 %v2291
      %2384 = vmatpush2.xpose.msra.mxu0 %v2290
      %2385 = vmatprep.subr.mxu0 %v2288
      %2386 = vmatpush2.xpose.msra.mxu0 %v2287
      %2387 = vmatprep.subr.mxu0 %v2285
      %2388 = vmatpush2.xpose.msra.mxu0 %v2284
      %2389 = vmatprep.subr.mxu0 %v2282
      %2390 = vmatpush2.xpose.msra.mxu0 %v2281
      %2391 = vmatprep.subr.mxu0 %v2279
      %2392 = vmatpush2.xpose.msra.mxu0 %v2278
      %2393 = vmatprep.subr.mxu0 %v2276
      %2394 = vmatpush2.xpose.msra.mxu0 %v2275
      %2395 = vmatprep.subr.mxu0 %v2273
      %2396 = vmatpush2.xpose.msra.mxu0 %v2272
      %2397 = vmatprep.mubr.f32.mxu0 %v2322
      %2398 = vmatmul.mubr.f32.gmra.mxu0 %v2321
      %v2399 = vpop.f32.mrf.mxu0
      %v2400 = vadd.f32 0.0, %v2399
      %v2401 = vpop.f32.mrf.mxu0
      %v2402 = vadd.f32 0.0, %v2401
      %2403 = vmatprep.mubr.f32.mxu0 %v2325
      %2404 = vmatmul.mubr.f32.gmra.mxu0 %v2324
      %v2405 = vpop.f32.mrf.mxu0
      %v2406 = vadd.f32 0.0, %v2405
      %v2407 = vpop.f32.mrf.mxu0
      %v2408 = vadd.f32 0.0, %v2407
      %2409 = vmatprep.mubr.f32.mxu0 %v2328
      %2410 = vmatmul.mubr.f32.gmra.mxu0 %v2327
      %v2411 = vpop.f32.mrf.mxu0
      %v2412 = vadd.f32 0.0, %v2411
      %v2413 = vpop.f32.mrf.mxu0
      %v2414 = vadd.f32 0.0, %v2413
      %2415 = vmatprep.mubr.f32.mxu0 %v2331
      %2416 = vmatmul.mubr.f32.gmra.mxu0 %v2330
      %v2417 = vpop.f32.mrf.mxu0
      %v2418 = vadd.f32 0.0, %v2417
      %v2419 = vpop.f32.mrf.mxu0
      %v2420 = vadd.f32 0.0, %v2419
      %2421 = vdwg.mxu0
      %2422 = vmatprep.subr.mxu0 0.0
      %2423 = vmatpush1.xpose.msra.mxu0 %v2271
      %2424 = vmatprep.subr.mxu0 0.0
      %2425 = vmatpush1.xpose.msra.mxu0 %v2268
      %2426 = vmatprep.subr.mxu0 0.0
      %2427 = vmatpush1.xpose.msra.mxu0 %v2265
      %2428 = vmatprep.subr.mxu0 0.0
      %2429 = vmatpush1.xpose.msra.mxu0 %v2262
      %2430 = vmatprep.subr.mxu0 0.0
      %2431 = vmatpush1.xpose.msra.mxu0 %v2259
      %2432 = vmatprep.subr.mxu0 0.0
      %2433 = vmatpush1.xpose.msra.mxu0 %v2256
      %2434 = vmatprep.subr.mxu0 0.0
      %2435 = vmatpush1.xpose.msra.mxu0 %v2253
      %2436 = vmatprep.subr.mxu0 0.0
      %2437 = vmatpush1.xpose.msra.mxu0 %v2250
      %2438 = vmatprep.subr.mxu0 0.0
      %2439 = vmatpush1.xpose.msra.mxu0 %v2247
      %2440 = vmatprep.subr.mxu0 0.0
      %2441 = vmatpush1.xpose.msra.mxu0 %v2244
      %2442 = vmatprep.subr.mxu0 0.0
      %2443 = vmatpush1.xpose.msra.mxu0 %v2241
      %2444 = vmatprep.subr.mxu0 0.0
      %2445 = vmatpush1.xpose.msra.mxu0 %v2238
      %2446 = vmatprep.subr.mxu0 0.0
      %2447 = vmatpush1.xpose.msra.mxu0 %v2235
      %2448 = vmatprep.subr.mxu0 0.0
      %2449 = vmatpush1.xpose.msra.mxu0 %v2232
      %2450 = vmatprep.subr.mxu0 0.0
      %2451 = vmatpush1.xpose.msra.mxu0 %v2229
      %2452 = vmatprep.subr.mxu0 0.0
      %2453 = vmatpush1.xpose.msra.mxu0 %v2226
      %2454 = vmatprep.subr.mxu0 0.0
      %2455 = vmatpush2.xpose.msra.mxu0 %v2319
      %2456 = vmatprep.subr.mxu0 0.0
      %2457 = vmatpush2.xpose.msra.mxu0 %v2316
      %2458 = vmatprep.subr.mxu0 0.0
      %2459 = vmatpush2.xpose.msra.mxu0 %v2313
      %2460 = vmatprep.subr.mxu0 0.0
      %2461 = vmatpush2.xpose.msra.mxu0 %v2310
      %2462 = vmatprep.subr.mxu0 0.0
      %2463 = vmatpush2.xpose.msra.mxu0 %v2307
      %2464 = vmatprep.subr.mxu0 0.0
      %2465 = vmatpush2.xpose.msra.mxu0 %v2304
      %2466 = vmatprep.subr.mxu0 0.0
      %2467 = vmatpush2.xpose.msra.mxu0 %v2301
      %2468 = vmatprep.subr.mxu0 0.0
      %2469 = vmatpush2.xpose.msra.mxu0 %v2298
      %2470 = vmatprep.subr.mxu0 0.0
      %2471 = vmatpush2.xpose.msra.mxu0 %v2295
      %2472 = vmatprep.subr.mxu0 0.0
      %2473 = vmatpush2.xpose.msra.mxu0 %v2292
      %2474 = vmatprep.subr.mxu0 0.0
      %2475 = vmatpush2.xpose.msra.mxu0 %v2289
      %2476 = vmatprep.subr.mxu0 0.0
      %2477 = vmatpush2.xpose.msra.mxu0 %v2286
      %2478 = vmatprep.subr.mxu0 0.0
      %2479 = vmatpush2.xpose.msra.mxu0 %v2283
      %2480 = vmatprep.subr.mxu0 0.0
      %2481 = vmatpush2.xpose.msra.mxu0 %v2280
      %2482 = vmatprep.subr.mxu0 0.0
      %2483 = vmatpush2.xpose.msra.mxu0 %v2277
      %2484 = vmatprep.subr.mxu0 0.0
      %2485 = vmatpush2.xpose.msra.mxu0 %v2274
      %2486 = vmatprep.mubr.f32.mxu0 0.0
      %2487 = vmatmul.mubr.f32.gmra.mxu0 %v2323
      %v2488 = vpop.f32.mrf.mxu0
      %v2489 = vadd.f32 %v2400, %v2488
      %v2490 = vpop.f32.mrf.mxu0
      %v2491 = vadd.f32 %v2402, %v2490
      %2492 = vmatprep.mubr.f32.mxu0 0.0
      %2493 = vmatmul.mubr.f32.gmra.mxu0 %v2326
      %v2494 = vpop.f32.mrf.mxu0
      %v2495 = vadd.f32 %v2406, %v2494
      %v2496 = vpop.f32.mrf.mxu0
      %v2497 = vadd.f32 %v2408, %v2496
      %2498 = vmatprep.mubr.f32.mxu0 0.0
      %2499 = vmatmul.mubr.f32.gmra.mxu0 %v2329
      %v2500 = vpop.f32.mrf.mxu0
      %v2501 = vadd.f32 %v2412, %v2500
      %v2502 = vpop.f32.mrf.mxu0
      %v2503 = vadd.f32 %v2414, %v2502
      %2504 = vmatprep.mubr.f32.mxu0 0.0
      %2505 = vmatmul.mubr.f32.gmra.mxu0 %v2332
      %v2506 = vpop.f32.mrf.mxu0
      %v2507 = vadd.f32 %v2418, %v2506
      %v2508 = vpop.f32.mrf.mxu0
      %v2509 = vadd.f32 %v2420, %v2508
      %2510 = vdwg.mxu0
      %v2511 = vadd.f32 %v2202, %v2489
      %v2512 = vadd.f32 %v2204, %v2491
      %v2513 = vadd.f32 %v2208, %v2495
      %v2514 = vadd.f32 %v2210, %v2497
      %v2515 = vadd.f32 %v2214, %v2501
      %v2516 = vadd.f32 %v2216, %v2503
      %v2517 = vadd.f32 %v2220, %v2507
      %v2518 = vadd.f32 %v2222, %v2509
      %v2519 = vld [vmem:[%s374] sm:$0xff]
      %v2521 = vcombine.high %v2519, %v2519
      %2523 = vst [vmem:[%s379] sm:$0xf] %v2519
      %2524 = vst [vmem:[%s379 + $0x8] sm:$0xf] %v2521
      %v2533 = vrot.slane %v2511, 4
      %v2534 = vrot.slane %v2512, 4
      %v2535 = vrot.slane %v2513, 4
      %v2536 = vsel %vm620, %v2533, %v2535
      %v2537 = vrot.slane %v2514, 4
      %v2538 = vsel %vm620, %v2534, %v2537
      %v2539 = vrot.slane %v2515, 4
      %v2540 = vsel %vm620, %v2535, %v2539
      %v2541 = vrot.slane %v2516, 4
      %v2542 = vsel %vm620, %v2537, %v2541
      %v2543 = vrot.slane %v2517, 4
      %v2544 = vsel %vm620, %v2539, %v2543
      %v2545 = vrot.slane %v2518, 4
      %v2546 = vsel %vm620, %v2541, %v2545
      %2557 = vst [vmem:[%s379] sm:$0xf0] %v2533
      %2558 = vst [vmem:[%s379 + $0x8] sm:$0xf0] %v2534
      %2559 = vst [vmem:[%s379 + $0x10] sm:$0xff] %v2536
      %2560 = vst [vmem:[%s379 + $0x18] sm:$0xff] %v2538
      %2561 = vst [vmem:[%s379 + $0x20] sm:$0xff] %v2540
      %2562 = vst [vmem:[%s379 + $0x28] sm:$0xff] %v2542
      %2563 = vst [vmem:[%s379 + $0x30] sm:$0xff] %v2544
      %2564 = vst [vmem:[%s379 + $0x38] sm:$0xff] %v2546
      %2565 = vst [vmem:[%s379 + $0x40] sm:$0xf] %v2543
      %2566 = vst [vmem:[%s379 + $0x48] sm:$0xf] %v2545
      %p2567 = scmp.lt.s32.totalorder %s21, 1
      %s2568 = scalar_select %p2567, %s21, 1
      %s2569 = smul.addr %s2568, 10
      %s2570 = smul.addr %s2569, 8
      %s2571 = scalar_lea.vmem %s10, %s2570
      // Predicated region
      $region61: #{bottleneck_forward.1} parent=59 // pred_check
        %p2572 = pneg %p259
      $region62: #{bottleneck_forward.1} parent=59 // pred_check_branch
        %2574 = sbr.rel (%p2572) target = $region64
      $region63: #{bottleneck_forward.1} parent=59 // pred_region
        _
      $region64: #{bottleneck_forward.1} parent=59 // pred_fallthru
        _
    $region60: #{bottleneck_forward.1} parent=5 // pred_fallthru
      _
    %p2575 = scmp.le.s32.totalorder 2, %s16
    // Predicated region
    $region65: #{bottleneck_forward.1} parent=5 // pred_check
      %p2576 = pneg %p2575
    $region66: #{bottleneck_forward.1} parent=5 // pred_check_branch
      %2578 = sbr.rel (%p2576) target = $region68
    $region67: #{bottleneck_forward.1} parent=5 // pred_region
      %s2579 = ssub.s32 %s16, 2
      // Predicated region
      $region69: #{bottleneck_forward.1} parent=67 // pred_check
        %p2580 = pneg %p265
      $region70: #{bottleneck_forward.1} parent=67 // pred_check_branch
        %2582 = sbr.rel (%p2580) target = $region72
      $region71: #{bottleneck_forward.1} parent=67 // pred_region
        %p2583 = scmp.lt.s32.totalorder %s22, 1
        %s2584 = scalar_select %p2583, %s22, 1
        %s2585 = smul.addr %s2584, 10
        %s2586 = smul.addr %s2585, 8
        %s2587 = scalar_lea.vmem %s10, %s2586
      $region72: #{bottleneck_forward.1} parent=67 // pred_fallthru
        _
    $region68: #{bottleneck_forward.1} parent=5 // pred_fallthru
      _
  $region6: #{bottleneck_forward.1} parent=0 // loop_footer
    %s20 = sadd.s32 1, %s16
  $region7: #{bottleneck_forward.1} parent=0 // loop_footer_branch
    %15 = sbr.rel target = $region3
  $region8: #{bottleneck_forward.1} parent=0 // loop_exit
    _

</llo_original>
